<compile_context>
chip_gen: v5e
topology: v5e:2x2
jax: 0.10.0
libtpu: 0.0.40
codegen_flags: <defaults>
</compile_context>

<pallas_src>
import jax
import jax.numpy as jnp
import numpy as np
from jax.experimental import pallas as pl
from jax.experimental.pallas import tpu as pltpu


def mfa_kernel(enc_ref, arg_ref, bias_ref, wf_ref, bf_ref, out_ref):
    tb, s, d_in = enc_ref.shape
    m = wf_ref.shape[0]

    enc = enc_ref[...]                               # [TB, S, D_in]
    enc_flat = enc.reshape(tb * s, d_in)             # [TB*S, D_in] (lane dim unchanged)
    arg = arg_ref[...]                               # [TB, D_out]
    bias = bias_ref[...]                             # [TB, S] additive mask (0 / -inf)

    att = None
    for i in range(m):                               # m is small & static -> unrolled
        # MXU: [TB*S, D_in] x [D_in, D_out] with pre-transposed weights.
        h = jnp.tanh(
            jnp.dot(enc_flat, wf_ref[i], preferred_element_type=jnp.float32)
            + bf_ref[i]                              # [1, D_out] broadcast
        )                                            # [TB*S, D_out]
        h = h.reshape(tb, s, -1)                     # [TB, S, D_out]
        # scores[b, t] = <h[b, t, :], arg[b, :]>  (VPU mul + lane reduce, no h.T)
        scores = jnp.sum(h * arg[:, None, :], axis=-1) + bias        # [TB, S]
        smax = jnp.max(scores, axis=-1, keepdims=True)
        p = jnp.exp(scores - smax)
        att_i = p / jnp.sum(p, axis=-1, keepdims=True)               # softmax
        att = att_i if att is None else jnp.maximum(att, att_i)

    # sent[b, :] = sum_t att[b, t] * enc[b, t, :]  (enc already VMEM-resident)
    sent = jnp.sum(att[:, :, None] * enc, axis=1)                    # [TB, D_in]
    out_ref[...] = sent.astype(out_ref.dtype)


def multi_factor_attention(enc_hs, src_mask, arg1, arg2, params, *, block_b=8):
    """enc_hs [B,S,D_in], src_mask [B,S] bool (True = masked), arg1/arg2 [B,D_in]."""
    B, S, D_in = enc_hs.shape
    Wf, bf, Ww, bw = params["Wf"], params["bf"], params["Ww"], params["bw"]
    m, D_out, _ = Wf.shape
    f32 = jnp.float32

    # arg projection hoisted out of the kernel: one batched, MXU-efficient matmul.
    arg = jnp.tanh(
        jnp.concatenate([arg1, arg2], axis=-1).astype(f32) @ Ww.T.astype(f32)
        + bw.reshape(1, D_out).astype(f32))                          # [B, D_out]

    # Additive mask bias: 0 where valid, -inf where masked (matches masked_fill).
    mask_bias = jnp.where(src_mask, -jnp.inf, 0.0).astype(f32)       # [B, S]

    # Pre-transposed factor weights so the kernel does x @ W with no in-kernel .T.
    Wf_t = jnp.transpose(Wf, (0, 2, 1)).astype(f32)                  # [m, D_in, D_out]
    bf_r = bf.reshape(m, 1, D_out).astype(f32)                       # [m, 1, D_out]

    enc = enc_hs.astype(f32)
    # NOTE: on v6e/v7x, casting enc/Wf_t to bfloat16 (keeping f32 accumulation)
    # doubles MXU throughput and halves VMEM/HBM traffic; kept f32 here so the
    # small-shape verification stays within tight tolerances.

    # Pad the batch to a multiple of the batch tile (TB >= 8 sublanes).
    tb = int(block_b)
    B_pad = ((B + tb - 1) // tb) * tb
    if B_pad != B:
        pad = B_pad - B
        enc = jnp.pad(enc, ((0, pad), (0, 0), (0, 0)))
        arg = jnp.pad(arg, ((0, pad), (0, 0)))
        mask_bias = jnp.pad(mask_bias, ((0, pad), (0, 0)))
    grid = (B_pad // tb,)

    # VMEM budget: double-buffered per-step blocks + (double-buffered) weights,
    # with 4x headroom; clamped to stay inside v7x's 64 MiB VMEM.
    elem = 4
    working = elem * (
        2 * (tb * S * D_in + tb * D_out + tb * S + tb * D_in)
        + 2 * m * (D_in * D_out + D_out))
    vmem_limit = int(min(64 * 1024 * 1024, max(4 * working, 8 * 1024 * 1024)))

    out = pl.pallas_call(
        mfa_kernel,
        out_shape=jax.ShapeDtypeStruct((B_pad, D_in), f32),
        grid_spec=pltpu.PrefetchScalarGridSpec(
            num_scalar_prefetch=0,
            grid=grid,
            in_specs=[
                pl.BlockSpec((tb, S, D_in), lambda b: (b, 0, 0)),      # enc_hs tile
                pl.BlockSpec((tb, D_out), lambda b: (b, 0)),           # arg tile
                pl.BlockSpec((tb, S), lambda b: (b, 0)),               # mask bias tile
                pl.BlockSpec((m, D_in, D_out), lambda b: (0, 0, 0)),   # Wf^T (grid-invariant)
                pl.BlockSpec((m, 1, D_out), lambda b: (0, 0, 0)),      # bf   (grid-invariant)
            ],
            out_specs=pl.BlockSpec((tb, D_in), lambda b: (b, 0)),
        ),
        compiler_params=pltpu.CompilerParams(
            dimension_semantics=("parallel",),
            vmem_limit_bytes=vmem_limit),
    )(enc, arg, mask_bias, Wf_t, bf_r)

    return out[:B]


def ref_forward(enc_hs, src_mask, arg1, arg2, params):
    """Pure-JAX reference mirroring the PyTorch forward."""
    Wf, bf, Ww, bw = params["Wf"], params["bf"], params["Ww"], params["bw"]
    arg = jnp.tanh(jnp.concatenate([arg1, arg2], -1) @ Ww.T + bw[0])   # [B, D_out]
    atts = []
    for i in range(Wf.shape[0]):
        h = jnp.tanh(enc_hs @ Wf[i].T + bf[i, 0])                      # [B, S, D_out]
        sc = jnp.einsum("bsd,bd->bs", h, arg)
        sc = jnp.where(src_mask, -jnp.inf, sc)
        atts.append(jax.nn.softmax(sc, axis=-1))
    att = jnp.max(jnp.stack(atts, axis=1), axis=1)                     # [B, S]
    return jnp.einsum("bs,bsd->bd", att, enc_hs)


if __name__ == "__main__":
    # Small, module-consistent shapes (batch chosen so the grid has >= 2 steps).
    B, S = 16, 8
    D_in, D_out = 32, 32
    M = 3  # factor_cnt

    key = jax.random.PRNGKey(0)
    k_enc, k_a1, k_a2, k_wf, k_bf, k_ww, k_bw = jax.random.split(key, 7)

    enc_hs = jax.random.normal(k_enc, (B, S, D_in), dtype=jnp.float32)
    arg1 = jax.random.normal(k_a1, (B, D_in), dtype=jnp.float32)
    arg2 = jax.random.normal(k_a2, (B, D_in), dtype=jnp.float32)

    # src_mask: mask out trailing positions per batch (True = masked), no empty rows.
    lengths = (jnp.arange(B, dtype=jnp.int32) % S) + 1
    src_mask = jnp.arange(S)[None, :] >= lengths[:, None]              # [B, S] bool

    # Deterministic parameter init (uniform a la nn.Linear, synthetic).
    lim_in = 1.0 / np.sqrt(D_in)
    lim_2in = 1.0 / np.sqrt(2 * D_in)
    params = {
        "Wf": jax.random.uniform(k_wf, (M, D_out, D_in), jnp.float32,
                                 -lim_in, lim_in),
        "bf": jax.random.uniform(k_bf, (M, 1, D_out), jnp.float32,
                                 -lim_in, lim_in),
        "Ww": jax.random.uniform(k_ww, (D_out, 2 * D_in), jnp.float32,
                                 -lim_2in, lim_2in),
        "bw": jax.random.uniform(k_bw, (1, D_out), jnp.float32,
                                 -lim_2in, lim_2in),
    }

    out = multi_factor_attention(enc_hs, src_mask, arg1, arg2, params, block_b=8)
    out = jax.block_until_ready(out)

    ref = ref_forward(enc_hs, src_mask, arg1, arg2, params)
    np.testing.assert_allclose(np.asarray(out), np.asarray(ref),
                               rtol=1e-5, atol=1e-5)
    print("KERNEL_OK")
</pallas_src>

<mosaic_0001>
module attributes {stable_mosaic.version = 11 : i64} {
  func.func @mfa_kernel(%arg0: i32, %arg1: memref<8x8x32xf32, #tpu.memory_space<vmem>>, %arg2: memref<8x32xf32, #tpu.memory_space<vmem>>, %arg3: memref<8x8xf32, #tpu.memory_space<vmem>>, %arg4: memref<3x32x32xf32, #tpu.memory_space<vmem>>, %arg5: memref<3x1x32xf32, #tpu.memory_space<vmem>>, %arg6: memref<8x32xf32, #tpu.memory_space<vmem>>) attributes {dimension_semantics = [#tpu.dimension_semantics<parallel>], iteration_bounds = array<i64: 2>, scalar_prefetch = 0 : i64, scratch_operands = 0 : i64, tpu.core_type = #tpu.core_type<tc>, window_params = [{transform_indices = @transform_0, window_bounds = array<i64: 8, 8, 32>}, {transform_indices = @transform_1, window_bounds = array<i64: 8, 32>}, {transform_indices = @transform_2, window_bounds = array<i64: 8, 8>}, {pipeline_mode = #tpu.pipeline_mode<synchronous>, transform_indices = @transform_3, window_bounds = array<i64: 3, 32, 32>}, {pipeline_mode = #tpu.pipeline_mode<synchronous>, transform_indices = @transform_4, window_bounds = array<i64: 3, 1, 32>}, {transform_indices = @transform_5, window_bounds = array<i64: 8, 32>}]} {
    %c0 = arith.constant 0 : index
    %c0_0 = arith.constant 0 : index
    %c0_1 = arith.constant 0 : index
    %0 = vector.load %arg1[%c0, %c0_0, %c0_1] : memref<8x8x32xf32, #tpu.memory_space<vmem>>, vector<8x8x32xf32>
    %1 = vector.shape_cast %0 : vector<8x8x32xf32> to vector<64x32xf32>
    %c0_2 = arith.constant 0 : index
    %c0_3 = arith.constant 0 : index
    %2 = vector.load %arg2[%c0_2, %c0_3] : memref<8x32xf32, #tpu.memory_space<vmem>>, vector<8x32xf32>
    %c0_4 = arith.constant 0 : index
    %c0_5 = arith.constant 0 : index
    %3 = vector.load %arg3[%c0_4, %c0_5] : memref<8x8xf32, #tpu.memory_space<vmem>>, vector<8x8xf32>
    %c0_6 = arith.constant 0 : index
    %c0_7 = arith.constant 0 : index
    %c0_8 = arith.constant 0 : index
    %4 = vector.load %arg4[%c0_6, %c0_7, %c0_8] : memref<3x32x32xf32, #tpu.memory_space<vmem>>, vector<1x32x32xf32>
    %5 = vector.shape_cast %4 : vector<1x32x32xf32> to vector<32x32xf32>
    %cst = arith.constant dense<0.000000e+00> : vector<64x32xf32>
    %6 = tpu.matmul %1, %5, %cst {dimension_numbers = #tpu.dot_dimension_numbers<[1], [0], [0], [1], [0, 0, 1, 1], [], []>} : vector<64x32xf32>, vector<32x32xf32>, vector<64x32xf32> -> vector<64x32xf32>
    %c0_9 = arith.constant 0 : index
    %c0_10 = arith.constant 0 : index
    %c0_11 = arith.constant 0 : index
    %7 = vector.load %arg5[%c0_9, %c0_10, %c0_11] : memref<3x1x32xf32, #tpu.memory_space<vmem>>, vector<1x1x32xf32>
    %8 = vector.shape_cast %7 : vector<1x1x32xf32> to vector<1x32xf32>
    %9 = vector.broadcast %8 : vector<1x32xf32> to vector<64x32xf32>
    %10 = arith.addf %6, %9 : vector<64x32xf32>
    %11 = math.tanh %10 : vector<64x32xf32>
    %12 = vector.shape_cast %11 : vector<64x32xf32> to vector<8x8x32xf32>
    %13 = vector.shape_cast %2 : vector<8x32xf32> to vector<8x1x32xf32>
    %14 = vector.broadcast %13 : vector<8x1x32xf32> to vector<8x8x32xf32>
    %15 = arith.mulf %12, %14 : vector<8x8x32xf32>
    %cst_12 = arith.constant dense<0.000000e+00> : vector<8x8xf32>
    %16 = vector.multi_reduction <add>, %15, %cst_12 [2] : vector<8x8x32xf32> to vector<8x8xf32>
    %17 = arith.addf %16, %3 : vector<8x8xf32>
    %cst_13 = arith.constant dense<0xFF800000> : vector<8xf32>
    %18 = vector.multi_reduction <maximumf>, %17, %cst_13 [1] : vector<8x8xf32> to vector<8xf32>
    %19 = vector.shape_cast %18 : vector<8xf32> to vector<8x1xf32>
    %20 = vector.broadcast %19 : vector<8x1xf32> to vector<8x8xf32>
    %21 = arith.subf %17, %20 : vector<8x8xf32>
    %22 = math.exp %21 : vector<8x8xf32>
    %cst_14 = arith.constant dense<0.000000e+00> : vector<8xf32>
    %23 = vector.multi_reduction <add>, %22, %cst_14 [1] : vector<8x8xf32> to vector<8xf32>
    %24 = vector.shape_cast %23 : vector<8xf32> to vector<8x1xf32>
    %25 = vector.broadcast %24 : vector<8x1xf32> to vector<8x8xf32>
    %26 = arith.divf %22, %25 : vector<8x8xf32>
    %c1 = arith.constant 1 : index
    %c0_15 = arith.constant 0 : index
    %c0_16 = arith.constant 0 : index
    %27 = vector.load %arg4[%c1, %c0_15, %c0_16] : memref<3x32x32xf32, #tpu.memory_space<vmem>>, vector<1x32x32xf32>
    %28 = vector.shape_cast %27 : vector<1x32x32xf32> to vector<32x32xf32>
    %cst_17 = arith.constant dense<0.000000e+00> : vector<64x32xf32>
    %29 = tpu.matmul %1, %28, %cst_17 {dimension_numbers = #tpu.dot_dimension_numbers<[1], [0], [0], [1], [0, 0, 1, 1], [], []>} : vector<64x32xf32>, vector<32x32xf32>, vector<64x32xf32> -> vector<64x32xf32>
    %c1_18 = arith.constant 1 : index
    %c0_19 = arith.constant 0 : index
    %c0_20 = arith.constant 0 : index
    %30 = vector.load %arg5[%c1_18, %c0_19, %c0_20] : memref<3x1x32xf32, #tpu.memory_space<vmem>>, vector<1x1x32xf32>
    %31 = vector.shape_cast %30 : vector<1x1x32xf32> to vector<1x32xf32>
    %32 = vector.broadcast %31 : vector<1x32xf32> to vector<64x32xf32>
    %33 = arith.addf %29, %32 : vector<64x32xf32>
    %34 = math.tanh %33 : vector<64x32xf32>
    %35 = vector.shape_cast %34 : vector<64x32xf32> to vector<8x8x32xf32>
    %36 = vector.shape_cast %2 : vector<8x32xf32> to vector<8x1x32xf32>
    %37 = vector.broadcast %36 : vector<8x1x32xf32> to vector<8x8x32xf32>
    %38 = arith.mulf %35, %37 : vector<8x8x32xf32>
    %cst_21 = arith.constant dense<0.000000e+00> : vector<8x8xf32>
    %39 = vector.multi_reduction <add>, %38, %cst_21 [2] : vector<8x8x32xf32> to vector<8x8xf32>
    %40 = arith.addf %39, %3 : vector<8x8xf32>
    %cst_22 = arith.constant dense<0xFF800000> : vector<8xf32>
    %41 = vector.multi_reduction <maximumf>, %40, %cst_22 [1] : vector<8x8xf32> to vector<8xf32>
    %42 = vector.shape_cast %41 : vector<8xf32> to vector<8x1xf32>
    %43 = vector.broadcast %42 : vector<8x1xf32> to vector<8x8xf32>
    %44 = arith.subf %40, %43 : vector<8x8xf32>
    %45 = math.exp %44 : vector<8x8xf32>
    %cst_23 = arith.constant dense<0.000000e+00> : vector<8xf32>
    %46 = vector.multi_reduction <add>, %45, %cst_23 [1] : vector<8x8xf32> to vector<8xf32>
    %47 = vector.shape_cast %46 : vector<8xf32> to vector<8x1xf32>
    %48 = vector.broadcast %47 : vector<8x1xf32> to vector<8x8xf32>
    %49 = arith.divf %45, %48 : vector<8x8xf32>
    %50 = arith.maximumf %26, %49 : vector<8x8xf32>
    %c2 = arith.constant 2 : index
    %c0_24 = arith.constant 0 : index
    %c0_25 = arith.constant 0 : index
    %51 = vector.load %arg4[%c2, %c0_24, %c0_25] : memref<3x32x32xf32, #tpu.memory_space<vmem>>, vector<1x32x32xf32>
    %52 = vector.shape_cast %51 : vector<1x32x32xf32> to vector<32x32xf32>
    %cst_26 = arith.constant dense<0.000000e+00> : vector<64x32xf32>
    %53 = tpu.matmul %1, %52, %cst_26 {dimension_numbers = #tpu.dot_dimension_numbers<[1], [0], [0], [1], [0, 0, 1, 1], [], []>} : vector<64x32xf32>, vector<32x32xf32>, vector<64x32xf32> -> vector<64x32xf32>
    %c2_27 = arith.constant 2 : index
    %c0_28 = arith.constant 0 : index
    %c0_29 = arith.constant 0 : index
    %54 = vector.load %arg5[%c2_27, %c0_28, %c0_29] : memref<3x1x32xf32, #tpu.memory_space<vmem>>, vector<1x1x32xf32>
    %55 = vector.shape_cast %54 : vector<1x1x32xf32> to vector<1x32xf32>
    %56 = vector.broadcast %55 : vector<1x32xf32> to vector<64x32xf32>
    %57 = arith.addf %53, %56 : vector<64x32xf32>
    %58 = math.tanh %57 : vector<64x32xf32>
    %59 = vector.shape_cast %58 : vector<64x32xf32> to vector<8x8x32xf32>
    %60 = vector.shape_cast %2 : vector<8x32xf32> to vector<8x1x32xf32>
    %61 = vector.broadcast %60 : vector<8x1x32xf32> to vector<8x8x32xf32>
    %62 = arith.mulf %59, %61 : vector<8x8x32xf32>
    %cst_30 = arith.constant dense<0.000000e+00> : vector<8x8xf32>
    %63 = vector.multi_reduction <add>, %62, %cst_30 [2] : vector<8x8x32xf32> to vector<8x8xf32>
    %64 = arith.addf %63, %3 : vector<8x8xf32>
    %cst_31 = arith.constant dense<0xFF800000> : vector<8xf32>
    %65 = vector.multi_reduction <maximumf>, %64, %cst_31 [1] : vector<8x8xf32> to vector<8xf32>
    %66 = vector.shape_cast %65 : vector<8xf32> to vector<8x1xf32>
    %67 = vector.broadcast %66 : vector<8x1xf32> to vector<8x8xf32>
    %68 = arith.subf %64, %67 : vector<8x8xf32>
    %69 = math.exp %68 : vector<8x8xf32>
    %cst_32 = arith.constant dense<0.000000e+00> : vector<8xf32>
    %70 = vector.multi_reduction <add>, %69, %cst_32 [1] : vector<8x8xf32> to vector<8xf32>
    %71 = vector.shape_cast %70 : vector<8xf32> to vector<8x1xf32>
    %72 = vector.broadcast %71 : vector<8x1xf32> to vector<8x8xf32>
    %73 = arith.divf %69, %72 : vector<8x8xf32>
    %74 = arith.maximumf %50, %73 : vector<8x8xf32>
    %75 = vector.shape_cast %74 : vector<8x8xf32> to vector<8x8x1xf32>
    %76 = vector.broadcast %75 : vector<8x8x1xf32> to vector<8x8x32xf32>
    %77 = arith.mulf %76, %0 : vector<8x8x32xf32>
    %cst_33 = arith.constant dense<0.000000e+00> : vector<8x32xf32>
    %78 = vector.multi_reduction <add>, %77, %cst_33 [1] : vector<8x8x32xf32> to vector<8x32xf32>
    %c0_34 = arith.constant 0 : index
    %c0_35 = arith.constant 0 : index
    %79 = vector.load %arg6[%c0_34, %c0_35] : memref<8x32xf32, #tpu.memory_space<vmem>>, vector<8x32xf32>
    tpu.vector_store %arg6[%c0_34, %c0_35], %78 {strides = array<i32>} : memref<8x32xf32, #tpu.memory_space<vmem>>, vector<8x32xf32>,
    return
  }
  func.func @transform_0(%arg0: i32) -> (i32, i32, i32) {
    %c0_i32 = arith.constant 0 : i32
    %c0_i32_0 = arith.constant 0 : i32
    %c0_i32_1 = arith.constant 0 : i32
    return %arg0, %c0_i32, %c0_i32_0 : i32, i32, i32
  }
  func.func @transform_1(%arg0: i32) -> (i32, i32) {
    %c0_i32 = arith.constant 0 : i32
    %c0_i32_0 = arith.constant 0 : i32
    return %arg0, %c0_i32 : i32, i32
  }
  func.func @transform_2(%arg0: i32) -> (i32, i32) {
    %c0_i32 = arith.constant 0 : i32
    %c0_i32_0 = arith.constant 0 : i32
    return %arg0, %c0_i32 : i32, i32
  }
  func.func @transform_3(%arg0: i32) -> (i32, i32, i32) {
    %c0_i32 = arith.constant 0 : i32
    %c0_i32_0 = arith.constant 0 : i32
    %c0_i32_1 = arith.constant 0 : i32
    %c0_i32_2 = arith.constant 0 : i32
    return %c0_i32, %c0_i32_0, %c0_i32_1 : i32, i32, i32
  }
  func.func @transform_4(%arg0: i32) -> (i32, i32, i32) {
    %c0_i32 = arith.constant 0 : i32
    %c0_i32_0 = arith.constant 0 : i32
    %c0_i32_1 = arith.constant 0 : i32
    %c0_i32_2 = arith.constant 0 : i32
    return %c0_i32, %c0_i32_0, %c0_i32_1 : i32, i32, i32
  }
  func.func @transform_5(%arg0: i32) -> (i32, i32) {
    %c0_i32 = arith.constant 0 : i32
    %c0_i32_0 = arith.constant 0 : i32
    return %arg0, %c0_i32 : i32, i32
  }
}

</mosaic_0001>

<llo_original>
// kernel: tpu_custom_call.1
$region0: #{tpu_custom_call.1}
  #allocation0 [shape = 'u32[]', space=smem, size = 0x4, offset = 0x4, fixed_abs, tag = 'smem constant byte address 0x4 - core index']
  #allocation1 [shape = 'u32[72,128]{1,0:T(1,128)}', space=vmem, size = 0x9000, scoped, tag = 'internal scratch']
  %s0 = inlined_call_operand.hbm [shape: f32[16,8,32], index: 0, kind: input, shape index: {}]
  %s1 = inlined_call_operand.vmem [shape: f32[16,32], index: 1, kind: input, shape index: {}]
  %s2 = inlined_call_operand.vmem [shape: f32[16,8], index: 2, kind: input, shape index: {}]
  %s3 = inlined_call_operand.hbm [shape: f32[3,32,32], index: 3, kind: input, shape index: {}]
  %s4 = inlined_call_operand.vmem [shape: f32[3,1,32], index: 4, kind: input, shape index: {}]
  %s5 = inlined_call_operand.hbm [shape: f32[16,32], index: 5, kind: output, shape index: {}]
  %s6 = sld [smem:[#allocation0]]
  $region61: #{tpu_custom_call.1} parent=0
    _
  %s8 = ssub.s32 1, %s6
  %s9 = scalar_select 0, %s8, %s6
  $region1: #{tpu_custom_call.1} parent=0
    #allocation2 [shape = 'u8[65536]{0}', space=vmem, size = 0x10000, scoped, tag = 'input window, operand 0']
    #allocation3 [shape = 's32[2]{0}', space=sflag, size = 0x8, scoped, tag = 'scoped memory for tpu_custom_call.1']
    #allocation4 [shape = 's32[2]{0}', space=sflag, size = 0x8, scoped, tag = 'scoped memory for tpu_custom_call.1']
    #allocation5 [shape = 'u8[49152]{0}', space=vmem, size = 0xc000, scoped, tag = 'input window, operand 3, single buffered']
    #allocation6 [shape = 's32[1]{0}', space=sflag, size = 0x4, scoped, tag = 'scoped memory for tpu_custom_call.1']
    #allocation7 [shape = 'u8[8192]{0}', space=vmem, size = 0x2000, scoped, tag = 'output window, operand 0']
    %10 = vsyncpa [#allocation3], 0
    %s11 = scalar_lea.sflag [#allocation3], 1
    %12 = vsyncpa %s11, 0
    %13 = vsyncpa [#allocation6], 0
    %14 = vsyncpa [#allocation4], 0
    %s15 = scalar_lea.sflag [#allocation4], 1
    %16 = vsyncpa %s15, 0
    loop: start=0, step=1, limit=4
    $region2: #{tpu_custom_call.1} parent=1 // loop_pre_header
      _
    $region3: #{tpu_custom_call.1} parent=1 // loop_header
      %s18 = sphi 0, %s22
      %p19 = scmp.ge.s32.totalorder %s18, 4
      %s28 = sphi 0, %s30
      %s31 = sphi 0, %s28
      %s32 = sphi 0, %s31
      %s48 = sphi 0, %s32
      %s54 = sphi 0, %s56
      %s57 = sphi 0, %s54
      %s58 = sphi 0, %s57
      %s74 = sphi 0, %s58
      %s80 = sphi 0, %s82
      %s83 = sphi 0, %s80
      %s84 = sphi 0, %s83
      %s100 = sphi 0, %s84
      %s104 = sphi 0, %s104
      %s106 = sphi 0, %s104
      %s107 = sphi 0, %s106
      %s121 = sphi 0, %s107
      %s125 = sphi 0, %s125
      %s127 = sphi 0, %s125
      %s128 = sphi 0, %s127
      %s142 = sphi 0, %s128
      %s148 = sphi 0, %s150
      %s151 = sphi 0, %s148
      %s152 = sphi 0, %s151
      %s168 = sphi 0, %s152
    $region4: #{tpu_custom_call.1} parent=1 // loop_header_branch
      %21 = sbr.rel (%p19) target = $region8
    $region5: #{tpu_custom_call.1} parent=1 // loop_body
      %s23 = ssub.s32 %s18, 1
      %s24 = ssub.s32 %s18, 2
      %s25 = sadd.s32 %s18, 1
      %s26 = ssub.s32 %s18, %s25
      %p27 = scmp.eq.s32.totalorder %s26, 0
      %s29 = sadd.s32 %s28, 1
      %s30 = scalar_select %p27, %s28, %s29
      %p33 = pneg %p27
      %p34 = scmp.eq.s32.totalorder %s18, 1
      %p35 = por %p33, %p34
      %p36 = scmp.ne.s32.totalorder %s28, %s31
      %p37 = scmp.eq.s32.totalorder %s18, 0
      %p38 = por %p36, %p37
      %p39 = scmp.ne.s32.totalorder %s28, %s31
      %p40 = scmp.eq.s32.totalorder %s23, 1
      %p41 = por %p39, %p40
      %p42 = scmp.ne.s32.totalorder %s31, %s32
      %p43 = scmp.eq.s32.totalorder %s23, 0
      %p44 = por %p42, %p43
      %p45 = scmp.ne.s32.totalorder %s31, %s32
      %p46 = scmp.eq.s32.totalorder %s24, 1
      %p47 = por %p45, %p46
      %p49 = scmp.ne.s32.totalorder %s32, %s48
      %p50 = scmp.eq.s32.totalorder %s24, 0
      %p51 = por %p49, %p50
      %s52 = ssub.s32 %s18, %s25
      %p53 = scmp.eq.s32.totalorder %s52, 0
      %s55 = sadd.s32 %s54, 1
      %s56 = scalar_select %p53, %s54, %s55
      %p59 = pneg %p53
      %p60 = scmp.eq.s32.totalorder %s18, 1
      %p61 = por %p59, %p60
      %p62 = scmp.ne.s32.totalorder %s54, %s57
      %p63 = scmp.eq.s32.totalorder %s18, 0
      %p64 = por %p62, %p63
      %p65 = scmp.ne.s32.totalorder %s54, %s57
      %p66 = scmp.eq.s32.totalorder %s23, 1
      %p67 = por %p65, %p66
      %p68 = scmp.ne.s32.totalorder %s57, %s58
      %p69 = scmp.eq.s32.totalorder %s23, 0
      %p70 = por %p68, %p69
      %p71 = scmp.ne.s32.totalorder %s57, %s58
      %p72 = scmp.eq.s32.totalorder %s24, 1
      %p73 = por %p71, %p72
      %p75 = scmp.ne.s32.totalorder %s58, %s74
      %p76 = scmp.eq.s32.totalorder %s24, 0
      %p77 = por %p75, %p76
      %s78 = ssub.s32 %s18, %s25
      %p79 = scmp.eq.s32.totalorder %s78, 0
      %s81 = sadd.s32 %s80, 1
      %s82 = scalar_select %p79, %s80, %s81
      %p85 = pneg %p79
      %p86 = scmp.eq.s32.totalorder %s18, 1
      %p87 = por %p85, %p86
      %p88 = scmp.ne.s32.totalorder %s80, %s83
      %p89 = scmp.eq.s32.totalorder %s18, 0
      %p90 = por %p88, %p89
      %p91 = scmp.ne.s32.totalorder %s80, %s83
      %p92 = scmp.eq.s32.totalorder %s23, 1
      %p93 = por %p91, %p92
      %p94 = scmp.ne.s32.totalorder %s83, %s84
      %p95 = scmp.eq.s32.totalorder %s23, 0
      %p96 = por %p94, %p95
      %p97 = scmp.ne.s32.totalorder %s83, %s84
      %p98 = scmp.eq.s32.totalorder %s24, 1
      %p99 = por %p97, %p98
      %p101 = scmp.ne.s32.totalorder %s84, %s100
      %p102 = scmp.eq.s32.totalorder %s24, 0
      %p103 = por %p101, %p102
      %s105 = sadd.s32 %s104, 1
      %p108 = scmp.eq.s32.totalorder %s18, 1
      %p109 = scmp.ne.s32.totalorder %s104, %s106
      %p110 = scmp.eq.s32.totalorder %s18, 0
      %p111 = por %p109, %p110
      %p112 = scmp.ne.s32.totalorder %s104, %s106
      %p113 = scmp.eq.s32.totalorder %s23, 1
      %p114 = por %p112, %p113
      %p115 = scmp.ne.s32.totalorder %s106, %s107
      %p116 = scmp.eq.s32.totalorder %s23, 0
      %p117 = por %p115, %p116
      %p118 = scmp.ne.s32.totalorder %s106, %s107
      %p119 = scmp.eq.s32.totalorder %s24, 1
      %p120 = por %p118, %p119
      %p122 = scmp.ne.s32.totalorder %s107, %s121
      %p123 = scmp.eq.s32.totalorder %s24, 0
      %p124 = por %p122, %p123
      %s126 = sadd.s32 %s125, 1
      %p129 = scmp.eq.s32.totalorder %s18, 1
      %p130 = scmp.ne.s32.totalorder %s125, %s127
      %p131 = scmp.eq.s32.totalorder %s18, 0
      %p132 = por %p130, %p131
      %p133 = scmp.ne.s32.totalorder %s125, %s127
      %p134 = scmp.eq.s32.totalorder %s23, 1
      %p135 = por %p133, %p134
      %p136 = scmp.ne.s32.totalorder %s127, %s128
      %p137 = scmp.eq.s32.totalorder %s23, 0
      %p138 = por %p136, %p137
      %p139 = scmp.ne.s32.totalorder %s127, %s128
      %p140 = scmp.eq.s32.totalorder %s24, 1
      %p141 = por %p139, %p140
      %p143 = scmp.ne.s32.totalorder %s128, %s142
      %p144 = scmp.eq.s32.totalorder %s24, 0
      %p145 = por %p143, %p144
      %s146 = ssub.s32 %s18, %s25
      %p147 = scmp.eq.s32.totalorder %s146, 0
      %s149 = sadd.s32 %s148, 1
      %s150 = scalar_select %p147, %s148, %s149
      %p153 = pneg %p147
      %p154 = scmp.eq.s32.totalorder %s18, 1
      %p155 = por %p153, %p154
      %p156 = scmp.ne.s32.totalorder %s148, %s151
      %p157 = scmp.eq.s32.totalorder %s18, 0
      %p158 = por %p156, %p157
      %p159 = scmp.ne.s32.totalorder %s148, %s151
      %p160 = scmp.eq.s32.totalorder %s23, 1
      %p161 = por %p159, %p160
      %p162 = scmp.ne.s32.totalorder %s151, %s152
      %p163 = scmp.eq.s32.totalorder %s23, 0
      %p164 = por %p162, %p163
      %p165 = scmp.ne.s32.totalorder %s151, %s152
      %p166 = scmp.eq.s32.totalorder %s24, 1
      %p167 = por %p165, %p166
      %p169 = scmp.ne.s32.totalorder %s152, %s168
      %p170 = scmp.eq.s32.totalorder %s24, 0
      %p171 = por %p169, %p170
      %p172 = scmp.le.s32.totalorder 1, %s18
      %p173 = scmp.lt.s32.totalorder %s18, 3
      %p174 = pnand %p172, %p173
      %p175 = pneg %p174
      // Predicated region
      $region9: #{tpu_custom_call.1} parent=5 // pred_check
        _
      $region10: #{tpu_custom_call.1} parent=5 // pred_check_branch
        %177 = sbr.rel (%p174) target = $region12
      $region11: #{tpu_custom_call.1} parent=5 // pred_region
        %s178 = ssub.s32 %s18, 1
        // Predicated region
        $region13: #{tpu_custom_call.1} parent=11 // pred_check
          %p179 = pneg %p117
        $region14: #{tpu_custom_call.1} parent=11 // pred_check_branch
          %181 = sbr.rel (%p179) target = $region16
        $region15: #{tpu_custom_call.1} parent=11 // pred_region
          %183 = vsyncadd [#allocation6], 0
          %s184 = sshll.u32 %s3, 4
          %s185 = int_to_ptr.hbm [resolvable:$true] %s184
          %s186 = sshll.u32 [#allocation5], 4
          %s187 = int_to_ptr.vmem [resolvable:$true] %s186
          %192 = dma.hbm_to_vmem [thread:$0]  %s185, 1536, %s187, [#allocation6], 128, 128, 8
        $region16: #{tpu_custom_call.1} parent=11 // pred_fallthru
          _
        // Predicated region
        $region17: #{tpu_custom_call.1} parent=11 // pred_check
          %p193 = pneg %p138
        $region18: #{tpu_custom_call.1} parent=11 // pred_check_branch
          %195 = sbr.rel (%p193) target = $region20
        $region19: #{tpu_custom_call.1} parent=11 // pred_region
          _
        $region20: #{tpu_custom_call.1} parent=11 // pred_fallthru
          _
      $region12: #{tpu_custom_call.1} parent=5 // pred_fallthru
        _
      %p196 = scmp.lt.s32.totalorder %s18, 2
      // Predicated region
      $region21: #{tpu_custom_call.1} parent=5 // pred_check
        %p197 = pneg %p196
      $region22: #{tpu_custom_call.1} parent=5 // pred_check_branch
        %199 = sbr.rel (%p197) target = $region24
      $region23: #{tpu_custom_call.1} parent=5 // pred_region
        // Predicated region
        $region25: #{tpu_custom_call.1} parent=23 // pred_check
          %p200 = pneg %p38
        $region26: #{tpu_custom_call.1} parent=23 // pred_check_branch
          %202 = sbr.rel (%p200) target = $region28
        $region27: #{tpu_custom_call.1} parent=23 // pred_region
          %s203 = sand.u32 %s28, 1
          %s204 = scalar_lea.sflag [#allocation3], %s203
          %s205 = sand.u32 %s28, 1
          %s206 = smul.addr %s205, 64
          %s207 = scalar_lea.vmem [#allocation2], %s206
          %s208 = smul.u32 8, %s18
          %210 = vsyncadd %s204, 0
          %s211 = smul.addr %s208, 8
          %s212 = scalar_lea.hbm %s0, %s211
          %s213 = sshll.u32 %s212, 4
          %s214 = int_to_ptr.hbm [resolvable:$true] %s213
          %s215 = sshll.u32 %s207, 4
          %s216 = int_to_ptr.vmem [resolvable:$true] %s215
          %221 = dma.hbm_to_vmem [thread:$0]  %s214, 1024, %s216, %s204, 128, 128, 8
        $region28: #{tpu_custom_call.1} parent=23 // pred_fallthru
          _
        // Predicated region
        $region29: #{tpu_custom_call.1} parent=23 // pred_check
          %p222 = pneg %p64
        $region30: #{tpu_custom_call.1} parent=23 // pred_check_branch
          %224 = sbr.rel (%p222) target = $region32
        $region31: #{tpu_custom_call.1} parent=23 // pred_region
          %p225 = scmp.lt.s32.totalorder %s18, 1
          %s226 = scalar_select %p225, %s18, 1
          %s227 = smul.addr %s226, 8
          %s228 = scalar_lea.vmem %s1, %s227
        $region32: #{tpu_custom_call.1} parent=23 // pred_fallthru
          _
        // Predicated region
        $region33: #{tpu_custom_call.1} parent=23 // pred_check
          %p229 = pneg %p90
        $region34: #{tpu_custom_call.1} parent=23 // pred_check_branch
          %231 = sbr.rel (%p229) target = $region36
        $region35: #{tpu_custom_call.1} parent=23 // pred_region
          %p232 = scmp.lt.s32.totalorder %s18, 1
          %s233 = scalar_select %p232, %s18, 1
          %s234 = smul.addr %s233, 8
          %s235 = scalar_lea.vmem %s2, %s234
        $region36: #{tpu_custom_call.1} parent=23 // pred_fallthru
          _
      $region24: #{tpu_custom_call.1} parent=5 // pred_fallthru
        _
      %p236 = scmp.le.s32.totalorder 1, %s18
      %p237 = scmp.lt.s32.totalorder %s18, 3
      %p238 = pnand %p236, %p237
      %p239 = pneg %p238
      // Predicated region
      $region37: #{tpu_custom_call.1} parent=5 // pred_check
        _
      $region38: #{tpu_custom_call.1} parent=5 // pred_check_branch
        %241 = sbr.rel (%p238) target = $region40
      $region39: #{tpu_custom_call.1} parent=5 // pred_region
        %s242 = ssub.s32 %s18, 1
        %s243 = sand.u32 %s31, 1
        %s244 = scalar_lea.sflag [#allocation3], %s243
        %s245 = sand.u32 %s31, 1
        %s246 = smul.addr %s245, 64
        %s247 = scalar_lea.vmem [#allocation2], %s246
        // Predicated region
        $region41: #{tpu_custom_call.1} parent=39 // pred_check
          %p248 = pneg %p44
        $region42: #{tpu_custom_call.1} parent=39 // pred_check_branch
          %250 = sbr.rel (%p248) target = $region44
        $region43: #{tpu_custom_call.1} parent=39 // pred_region
          %252 = dma.done %s244, 1024
        $region44: #{tpu_custom_call.1} parent=39 // pred_fallthru
          _
        // Predicated region
        $region45: #{tpu_custom_call.1} parent=39 // pred_check
          %p253 = pneg %p117
        $region46: #{tpu_custom_call.1} parent=39 // pred_check_branch
          %255 = sbr.rel (%p253) target = $region48
        $region47: #{tpu_custom_call.1} parent=39 // pred_region
          %257 = dma.done [#allocation6], 1536
        $region48: #{tpu_custom_call.1} parent=39 // pred_fallthru
          _
        %s258 = sand.u32 %s31, 1
        %s259 = scalar_lea.sflag [#allocation3], %s258
        %s260 = sand.u32 %s31, 1
        %s261 = smul.addr %s260, 64
        %s262 = scalar_lea.vmem [#allocation2], %s261
        %p263 = pneg %p44
        %p264 = pneg %p41
        %p265 = scmp.lt.s32.totalorder %s23, 1
        %s266 = scalar_select %p265, %s23, 1
        %s267 = smul.addr %s266, 8
        %s268 = scalar_lea.vmem %s1, %s267
        %p269 = pneg %p70
        %p270 = pneg %p67
        %p271 = scmp.lt.s32.totalorder %s23, 1
        %s272 = scalar_select %p271, %s23, 1
        %s273 = smul.addr %s272, 8
        %s274 = scalar_lea.vmem %s2, %s273
        %p275 = pneg %p96
        %p276 = pneg %p93
        %p277 = pneg %p117
        %p278 = pneg %p114
        %p279 = pneg %p138
        %p280 = pneg %p135
        %p281 = pneg %p164
        %p282 = pneg %p161
        %s283 = sand.u32 %s151, 1
        %s284 = scalar_lea.sflag [#allocation4], %s283
        %s285 = sand.u32 %s151, 1
        %s286 = smul.addr %s285, 8
        %s287 = scalar_lea.vmem [#allocation7], %s286
        %s288 = smul.u32 8, %s23
        %p289 = scmp.lt.s32.totalorder %s23, 1
        %s290 = scalar_select %p289, %s23, 1
        %s291 = smul.addr %s290, 8
        %s292 = scalar_lea.vmem %s1, %s291
        %p293 = scmp.lt.s32.totalorder %s23, 1
        %s294 = scalar_select %p293, %s23, 1
        %s295 = smul.addr %s294, 8
        %s296 = scalar_lea.vmem %s2, %s295
        %v297 = vld [vmem:[%s247] sm:$0xff]
        %v298 = vld [vmem:[%s247 + $0x8] sm:$0xff]
        %v299 = vld [vmem:[%s247 + $0x10] sm:$0xff]
        %v300 = vld [vmem:[%s247 + $0x18] sm:$0xff]
        %v301 = vld [vmem:[%s247 + $0x20] sm:$0xff]
        %v302 = vld [vmem:[%s247 + $0x28] sm:$0xff]
        %v303 = vld [vmem:[%s247 + $0x30] sm:$0xff]
        %v304 = vld [vmem:[%s247 + $0x38] sm:$0xff]
        %v305 = vld [vmem:[%s292] sm:$0xff]
        %v306 = vld [vmem:[%s296] sm:$0xff]
        %v307 = vld [vmem:[#allocation5] sm:$0xff]
        %v308 = vld [vmem:[#allocation5 + $0x8] sm:$0xff]
        %v309 = vld [vmem:[#allocation5 + $0x10] sm:$0xff]
        %v310 = vld [vmem:[#allocation5 + $0x18] sm:$0xff]
        %v311 = vld [vmem:[%s4] sm:$0x1]
        %v313 = vperm.slane %v311, 0
        %vm315 = vcmask 261120
        %v317 = vsel %vm315, %v297, 0
        %v320 = vsel %vm315, %v298, 0
        %v323 = vsel %vm315, %v299, 0
        %v326 = vsel %vm315, %v300, 0
        %v329 = vsel %vm315, %v301, 0
        %v332 = vsel %vm315, %v302, 0
        %v335 = vsel %vm315, %v303, 0
        %v338 = vsel %vm315, %v304, 0
        %340 = vmatpush.msra.mxu0 0.0
        %341 = vmatpush.msra.mxu0 0.0
        %342 = vmatpush.msra.mxu0 0.0
        %343 = vmatpush.msra.mxu0 0.0
        %344 = vmatpush.msra.mxu0 0.0
        %345 = vmatpush.msra.mxu0 0.0
        %346 = vmatpush.msra.mxu0 0.0
        %347 = vmatpush.msra.mxu0 0.0
        %348 = vmatpush.msra.mxu0 0.0
        %349 = vmatpush.msra.mxu0 0.0
        %350 = vmatpush.msra.mxu0 0.0
        %351 = vmatpush.msra.mxu0 0.0
        %352 = vmatpush.msra.mxu0 %v310
        %353 = vmatpush.msra.mxu0 %v309
        %354 = vmatpush.msra.mxu0 %v308
        %355 = vmatpush.msra.mxu0 %v307
        %356 = vmatmul.f32.gmra.mxu0 %v317
        %v357 = vpop.f32.mrf.mxu0
        %v358 = vadd.f32 %v313, %v357
        %359 = vmatmul.f32.gmra.mxu0 %v320
        %v360 = vpop.f32.mrf.mxu0
        %v361 = vadd.f32 %v313, %v360
        %362 = vmatmul.f32.gmra.mxu0 %v323
        %v363 = vpop.f32.mrf.mxu0
        %v364 = vadd.f32 %v313, %v363
        %365 = vmatmul.f32.gmra.mxu0 %v326
        %v366 = vpop.f32.mrf.mxu0
        %v367 = vadd.f32 %v313, %v366
        %368 = vmatmul.f32.gmra.mxu0 %v329
        %v369 = vpop.f32.mrf.mxu0
        %v370 = vadd.f32 %v313, %v369
        %371 = vmatmul.f32.gmra.mxu0 %v332
        %v372 = vpop.f32.mrf.mxu0
        %v373 = vadd.f32 %v313, %v372
        %374 = vmatmul.f32.gmra.mxu0 %v335
        %v375 = vpop.f32.mrf.mxu0
        %v376 = vadd.f32 %v313, %v375
        %377 = vmatmul.f32.gmra.mxu0 %v338
        %v378 = vpop.f32.mrf.mxu0
        %v379 = vadd.f32 %v313, %v378
        %380 = vdwg.mxu0
        %v381 = vtanh.pop %v358
        %v382 = vtanh.pop %v361
        %v383 = vtanh.pop %v364
        %v384 = vtanh.pop %v367
        %v385 = vtanh.pop %v370
        %v386 = vtanh.pop %v373
        %v387 = vtanh.pop %v376
        %v388 = vtanh.pop %v379
        %v390 = vrot.slane %v305, 1
        %v391 = vrot.slane %v305, 2
        %v392 = vrot.slane %v305, 3
        %v393 = vrot.slane %v305, 4
        %v394 = vrot.slane %v305, 5
        %v395 = vrot.slane %v305, 6
        %v396 = vrot.slane %v305, 7
        %v397 = vperm.slane %v305, 0
        %v398 = vperm.slane %v390, 0
        %v399 = vperm.slane %v391, 0
        %v400 = vperm.slane %v392, 0
        %v401 = vperm.slane %v393, 0
        %v402 = vperm.slane %v394, 0
        %v403 = vperm.slane %v395, 0
        %v404 = vperm.slane %v396, 0
        %v413 = vmul.f32 %v381, %v397
        %v414 = vmul.f32 %v382, %v398
        %v415 = vmul.f32 %v383, %v399
        %v416 = vmul.f32 %v384, %v400
        %v417 = vmul.f32 %v385, %v401
        %v418 = vmul.f32 %v386, %v402
        %v419 = vmul.f32 %v387, %v403
        %v420 = vmul.f32 %v388, %v404
        %v421 = vsel %vm315, %v413, 0.0
        %422 = vadd.xlane.f32.xlu0 %v421
        %v423 = vpop.xlane.xlu0 %422
        %v424 = vsel %vm315, %v414, 0.0
        %425 = vadd.xlane.f32.xlu0 %v424
        %v426 = vpop.xlane.xlu0 %425
        %v427 = vsel %vm315, %v415, 0.0
        %428 = vadd.xlane.f32.xlu0 %v427
        %v429 = vpop.xlane.xlu0 %428
        %v430 = vsel %vm315, %v416, 0.0
        %431 = vadd.xlane.f32.xlu0 %v430
        %v432 = vpop.xlane.xlu0 %431
        %v433 = vsel %vm315, %v417, 0.0
        %434 = vadd.xlane.f32.xlu0 %v433
        %v435 = vpop.xlane.xlu0 %434
        %v436 = vsel %vm315, %v418, 0.0
        %437 = vadd.xlane.f32.xlu0 %v436
        %v438 = vpop.xlane.xlu0 %437
        %v439 = vsel %vm315, %v419, 0.0
        %440 = vadd.xlane.f32.xlu0 %v439
        %v441 = vpop.xlane.xlu0 %440
        %v442 = vsel %vm315, %v420, 0.0
        %443 = vadd.xlane.f32.xlu0 %v442
        %v444 = vpop.xlane.xlu0 %443
        %v446 = vperm.slane %v306, 0
        %v447 = vlaneseq
        %v448 = vshrl.u32 %v447, 7
        %450 = vset.pattern.permute.xlu0 %v448
        %451 = vperm.xlu0 %450, %v446
        %v452 = vpop.permute.xlu0 %451
        %v453 = vperm.slane %v306, 1
        %v454 = vlaneseq
        %v455 = vshrl.u32 %v454, 7
        %457 = vset.pattern.permute.xlu0 %v455
        %458 = vperm.xlu0 %457, %v453
        %v459 = vpop.permute.xlu0 %458
        %v460 = vperm.slane %v306, 2
        %v461 = vlaneseq
        %v462 = vshrl.u32 %v461, 7
        %464 = vset.pattern.permute.xlu0 %v462
        %465 = vperm.xlu0 %464, %v460
        %v466 = vpop.permute.xlu0 %465
        %v467 = vperm.slane %v306, 3
        %v468 = vlaneseq
        %v469 = vshrl.u32 %v468, 7
        %471 = vset.pattern.permute.xlu0 %v469
        %472 = vperm.xlu0 %471, %v467
        %v473 = vpop.permute.xlu0 %472
        %v474 = vperm.slane %v306, 4
        %v475 = vlaneseq
        %v476 = vshrl.u32 %v475, 7
        %478 = vset.pattern.permute.xlu0 %v476
        %479 = vperm.xlu0 %478, %v474
        %v480 = vpop.permute.xlu0 %479
        %v481 = vperm.slane %v306, 5
        %v482 = vlaneseq
        %v483 = vshrl.u32 %v482, 7
        %485 = vset.pattern.permute.xlu0 %v483
        %486 = vperm.xlu0 %485, %v481
        %v487 = vpop.permute.xlu0 %486
        %v488 = vperm.slane %v306, 6
        %v489 = vlaneseq
        %v490 = vshrl.u32 %v489, 7
        %492 = vset.pattern.permute.xlu0 %v490
        %493 = vperm.xlu0 %492, %v488
        %v494 = vpop.permute.xlu0 %493
        %v495 = vperm.slane %v306, 7
        %v496 = vlaneseq
        %v497 = vshrl.u32 %v496, 7
        %499 = vset.pattern.permute.xlu0 %v497
        %500 = vperm.xlu0 %499, %v495
        %v501 = vpop.permute.xlu0 %500
        %v510 = vadd.f32 %v423, %v452
        %v511 = vadd.f32 %v426, %v459
        %v512 = vadd.f32 %v429, %v466
        %v513 = vadd.f32 %v432, %v473
        %v514 = vadd.f32 %v435, %v480
        %v515 = vadd.f32 %v438, %v487
        %v516 = vadd.f32 %v441, %v494
        %v517 = vadd.f32 %v444, %v501
        %526 = vset.pattern.permute.xlu0 0
        %527 = vperm.xlu0 %526, %v510
        %v528 = vpop.permute.xlu0 %527
        %529 = vset.pattern.permute.xlu0 0
        %530 = vperm.xlu0 %529, %v511
        %v531 = vpop.permute.xlu0 %530
        %532 = vset.pattern.permute.xlu0 0
        %533 = vperm.xlu0 %532, %v512
        %v534 = vpop.permute.xlu0 %533
        %535 = vset.pattern.permute.xlu0 0
        %536 = vperm.xlu0 %535, %v513
        %v537 = vpop.permute.xlu0 %536
        %538 = vset.pattern.permute.xlu0 0
        %539 = vperm.xlu0 %538, %v514
        %v540 = vpop.permute.xlu0 %539
        %541 = vset.pattern.permute.xlu0 0
        %542 = vperm.xlu0 %541, %v515
        %v543 = vpop.permute.xlu0 %542
        %544 = vset.pattern.permute.xlu0 0
        %545 = vperm.xlu0 %544, %v516
        %v546 = vpop.permute.xlu0 %545
        %547 = vset.pattern.permute.xlu0 0
        %548 = vperm.xlu0 %547, %v517
        %v549 = vpop.permute.xlu0 %548
        %v550 = vlaneseq
        %v551 = vand.u32 %v550, 127
        %v552 = vperm.slane %v528, %v551
        %v553 = vperm.slane %v531, %v551
        %v554 = vperm.slane %v534, %v551
        %v555 = vperm.slane %v537, %v551
        %v556 = vperm.slane %v540, %v551
        %v557 = vperm.slane %v543, %v551
        %v558 = vperm.slane %v546, %v551
        %v559 = vperm.slane %v549, %v551
        %vm560 = vcmask 1041409
        %v561 = vsel %vm560, %v553, %v552
        %vm562 = vcmask 1042434
        %v563 = vsel %vm562, %v554, %v561
        %vm564 = vcmask 1043459
        %v565 = vsel %vm564, %v555, %v563
        %vm566 = vcmask 1044484
        %v567 = vsel %vm566, %v556, %v565
        %vm568 = vcmask 1045509
        %v569 = vsel %vm568, %v557, %v567
        %vm570 = vcmask 1046534
        %v571 = vsel %vm570, %v558, %v569
        %vm572 = vcmask 1047559
        %v573 = vsel %vm572, %v559, %v571
        %vm575 = vcmask 64512
        %v576 = vsel %vm575, %v573, -inf
        %577 = vmax.xlane.f32.xlu0 %v576
        %v578 = vpop.xlane.xlu0 %577
        %v580 = vperm.slane %v578, 0
        %v581 = vperm.slane %v578, 1
        %v582 = vperm.slane %v578, 2
        %v583 = vperm.slane %v578, 3
        %v584 = vperm.slane %v578, 4
        %v585 = vperm.slane %v578, 5
        %v586 = vperm.slane %v578, 6
        %v587 = vperm.slane %v578, 7
        %v596 = vsub.f32 %v510, %v580
        %v597 = vsub.f32 %v511, %v581
        %v598 = vsub.f32 %v512, %v582
        %v599 = vsub.f32 %v513, %v583
        %v600 = vsub.f32 %v514, %v584
        %v601 = vsub.f32 %v515, %v585
        %v602 = vsub.f32 %v516, %v586
        %v603 = vsub.f32 %v517, %v587
        %v604 = vmul.f32 %v596, 1.442695
        %v605 = vpow.pop %v604
        %v606 = vmul.f32 %v597, 1.442695
        %v607 = vpow.pop %v606
        %v608 = vmul.f32 %v598, 1.442695
        %v609 = vpow.pop %v608
        %v610 = vmul.f32 %v599, 1.442695
        %v611 = vpow.pop %v610
        %v612 = vmul.f32 %v600, 1.442695
        %v613 = vpow.pop %v612
        %v614 = vmul.f32 %v601, 1.442695
        %v615 = vpow.pop %v614
        %v616 = vmul.f32 %v602, 1.442695
        %v617 = vpow.pop %v616
        %v618 = vmul.f32 %v603, 1.442695
        %v619 = vpow.pop %v618
        %628 = vset.pattern.permute.xlu0 0
        %629 = vperm.xlu0 %628, %v605
        %v630 = vpop.permute.xlu0 %629
        %631 = vset.pattern.permute.xlu0 0
        %632 = vperm.xlu0 %631, %v607
        %v633 = vpop.permute.xlu0 %632
        %634 = vset.pattern.permute.xlu0 0
        %635 = vperm.xlu0 %634, %v609
        %v636 = vpop.permute.xlu0 %635
        %637 = vset.pattern.permute.xlu0 0
        %638 = vperm.xlu0 %637, %v611
        %v639 = vpop.permute.xlu0 %638
        %640 = vset.pattern.permute.xlu0 0
        %641 = vperm.xlu0 %640, %v613
        %v642 = vpop.permute.xlu0 %641
        %643 = vset.pattern.permute.xlu0 0
        %644 = vperm.xlu0 %643, %v615
        %v645 = vpop.permute.xlu0 %644
        %646 = vset.pattern.permute.xlu0 0
        %647 = vperm.xlu0 %646, %v617
        %v648 = vpop.permute.xlu0 %647
        %649 = vset.pattern.permute.xlu0 0
        %650 = vperm.xlu0 %649, %v619
        %v651 = vpop.permute.xlu0 %650
        %v652 = vperm.slane %v630, %v551
        %v653 = vperm.slane %v633, %v551
        %v654 = vperm.slane %v636, %v551
        %v655 = vperm.slane %v639, %v551
        %v656 = vperm.slane %v642, %v551
        %v657 = vperm.slane %v645, %v551
        %v658 = vperm.slane %v648, %v551
        %v659 = vperm.slane %v651, %v551
        %v660 = vsel %vm560, %v653, %v652
        %v661 = vsel %vm562, %v654, %v660
        %v662 = vsel %vm564, %v655, %v661
        %v663 = vsel %vm566, %v656, %v662
        %v664 = vsel %vm568, %v657, %v663
        %v665 = vsel %vm570, %v658, %v664
        %v666 = vsel %vm572, %v659, %v665
        %v668 = vsel %vm575, %v666, 0.0
        %669 = vadd.xlane.f32.xlu0 %v668
        %v670 = vpop.xlane.xlu0 %669
        %v672 = vperm.slane %v670, 0
        %v673 = vperm.slane %v670, 1
        %v674 = vperm.slane %v670, 2
        %v675 = vperm.slane %v670, 3
        %v676 = vperm.slane %v670, 4
        %v677 = vperm.slane %v670, 5
        %v678 = vperm.slane %v670, 6
        %v679 = vperm.slane %v670, 7
        %v688 = vrcp.pop %v672
        %v689 = vmul.f32 %v672, %v688
        %v690 = vsub.f32 1.0, %v689
        %v691 = vmul.f32 %v688, %v690
        %v692 = vadd.f32 %v688, %v691
        %vm693 = vweird.f32 %v672
        %vm694 = vweird.f32 %v688
        %vm695 = vmor %vm693, %vm694
        %v696 = vsel %vm695, %v688, %v692
        %v697 = vand.u32 2147483647, %v672
        %vm698 = vcmp.eq.f32.partialorder %v697, 8.507059e+37
        %v699 = vand.u32 %v672, 2147483648
        %v700 = vor.u32 1.1754944e-38, %v699
        %v701 = vsel %vm698, %v700, %v696
        %v702 = vmul.f32 %v605, %v701
        %v703 = vrcp.pop %v673
        %v704 = vmul.f32 %v673, %v703
        %v705 = vsub.f32 1.0, %v704
        %v706 = vmul.f32 %v703, %v705
        %v707 = vadd.f32 %v703, %v706
        %vm708 = vweird.f32 %v673
        %vm709 = vweird.f32 %v703
        %vm710 = vmor %vm708, %vm709
        %v711 = vsel %vm710, %v703, %v707
        %v712 = vand.u32 2147483647, %v673
        %vm713 = vcmp.eq.f32.partialorder %v712, 8.507059e+37
        %v714 = vand.u32 %v673, 2147483648
        %v715 = vor.u32 1.1754944e-38, %v714
        %v716 = vsel %vm713, %v715, %v711
        %v717 = vmul.f32 %v607, %v716
        %v718 = vrcp.pop %v674
        %v719 = vmul.f32 %v674, %v718
        %v720 = vsub.f32 1.0, %v719
        %v721 = vmul.f32 %v718, %v720
        %v722 = vadd.f32 %v718, %v721
        %vm723 = vweird.f32 %v674
        %vm724 = vweird.f32 %v718
        %vm725 = vmor %vm723, %vm724
        %v726 = vsel %vm725, %v718, %v722
        %v727 = vand.u32 2147483647, %v674
        %vm728 = vcmp.eq.f32.partialorder %v727, 8.507059e+37
        %v729 = vand.u32 %v674, 2147483648
        %v730 = vor.u32 1.1754944e-38, %v729
        %v731 = vsel %vm728, %v730, %v726
        %v732 = vmul.f32 %v609, %v731
        %v733 = vrcp.pop %v675
        %v734 = vmul.f32 %v675, %v733
        %v735 = vsub.f32 1.0, %v734
        %v736 = vmul.f32 %v733, %v735
        %v737 = vadd.f32 %v733, %v736
        %vm738 = vweird.f32 %v675
        %vm739 = vweird.f32 %v733
        %vm740 = vmor %vm738, %vm739
        %v741 = vsel %vm740, %v733, %v737
        %v742 = vand.u32 2147483647, %v675
        %vm743 = vcmp.eq.f32.partialorder %v742, 8.507059e+37
        %v744 = vand.u32 %v675, 2147483648
        %v745 = vor.u32 1.1754944e-38, %v744
        %v746 = vsel %vm743, %v745, %v741
        %v747 = vmul.f32 %v611, %v746
        %v748 = vrcp.pop %v676
        %v749 = vmul.f32 %v676, %v748
        %v750 = vsub.f32 1.0, %v749
        %v751 = vmul.f32 %v748, %v750
        %v752 = vadd.f32 %v748, %v751
        %vm753 = vweird.f32 %v676
        %vm754 = vweird.f32 %v748
        %vm755 = vmor %vm753, %vm754
        %v756 = vsel %vm755, %v748, %v752
        %v757 = vand.u32 2147483647, %v676
        %vm758 = vcmp.eq.f32.partialorder %v757, 8.507059e+37
        %v759 = vand.u32 %v676, 2147483648
        %v760 = vor.u32 1.1754944e-38, %v759
        %v761 = vsel %vm758, %v760, %v756
        %v762 = vmul.f32 %v613, %v761
        %v763 = vrcp.pop %v677
        %v764 = vmul.f32 %v677, %v763
        %v765 = vsub.f32 1.0, %v764
        %v766 = vmul.f32 %v763, %v765
        %v767 = vadd.f32 %v763, %v766
        %vm768 = vweird.f32 %v677
        %vm769 = vweird.f32 %v763
        %vm770 = vmor %vm768, %vm769
        %v771 = vsel %vm770, %v763, %v767
        %v772 = vand.u32 2147483647, %v677
        %vm773 = vcmp.eq.f32.partialorder %v772, 8.507059e+37
        %v774 = vand.u32 %v677, 2147483648
        %v775 = vor.u32 1.1754944e-38, %v774
        %v776 = vsel %vm773, %v775, %v771
        %v777 = vmul.f32 %v615, %v776
        %v778 = vrcp.pop %v678
        %v779 = vmul.f32 %v678, %v778
        %v780 = vsub.f32 1.0, %v779
        %v781 = vmul.f32 %v778, %v780
        %v782 = vadd.f32 %v778, %v781
        %vm783 = vweird.f32 %v678
        %vm784 = vweird.f32 %v778
        %vm785 = vmor %vm783, %vm784
        %v786 = vsel %vm785, %v778, %v782
        %v787 = vand.u32 2147483647, %v678
        %vm788 = vcmp.eq.f32.partialorder %v787, 8.507059e+37
        %v789 = vand.u32 %v678, 2147483648
        %v790 = vor.u32 1.1754944e-38, %v789
        %v791 = vsel %vm788, %v790, %v786
        %v792 = vmul.f32 %v617, %v791
        %v793 = vrcp.pop %v679
        %v794 = vmul.f32 %v679, %v793
        %v795 = vsub.f32 1.0, %v794
        %v796 = vmul.f32 %v793, %v795
        %v797 = vadd.f32 %v793, %v796
        %vm798 = vweird.f32 %v679
        %vm799 = vweird.f32 %v793
        %vm800 = vmor %vm798, %vm799
        %v801 = vsel %vm800, %v793, %v797
        %v802 = vand.u32 2147483647, %v679
        %vm803 = vcmp.eq.f32.partialorder %v802, 8.507059e+37
        %v804 = vand.u32 %v679, 2147483648
        %v805 = vor.u32 1.1754944e-38, %v804
        %v806 = vsel %vm803, %v805, %v801
        %v807 = vmul.f32 %v619, %v806
        %s808 = scalar_lea.vmem [#allocation5], 32
        %v809 = vld [vmem:[%s808] sm:$0xff]
        %v810 = vld [vmem:[%s808 + $0x8] sm:$0xff]
        %v811 = vld [vmem:[%s808 + $0x10] sm:$0xff]
        %v812 = vld [vmem:[%s808 + $0x18] sm:$0xff]
        %s813 = scalar_lea.vmem %s4, 1
        %v814 = vld [vmem:[%s813] sm:$0x1]
        %v816 = vperm.slane %v814, 0
        %818 = vmatpush.msra.mxu0 0.0
        %819 = vmatpush.msra.mxu0 0.0
        %820 = vmatpush.msra.mxu0 0.0
        %821 = vmatpush.msra.mxu0 0.0
        %822 = vmatpush.msra.mxu0 0.0
        %823 = vmatpush.msra.mxu0 0.0
        %824 = vmatpush.msra.mxu0 0.0
        %825 = vmatpush.msra.mxu0 0.0
        %826 = vmatpush.msra.mxu0 0.0
        %827 = vmatpush.msra.mxu0 0.0
        %828 = vmatpush.msra.mxu0 0.0
        %829 = vmatpush.msra.mxu0 0.0
        %830 = vmatpush.msra.mxu0 %v812
        %831 = vmatpush.msra.mxu0 %v811
        %832 = vmatpush.msra.mxu0 %v810
        %833 = vmatpush.msra.mxu0 %v809
        %834 = vmatmul.f32.gmra.mxu0 %v317
        %v835 = vpop.f32.mrf.mxu0
        %v836 = vadd.f32 %v816, %v835
        %837 = vmatmul.f32.gmra.mxu0 %v320
        %v838 = vpop.f32.mrf.mxu0
        %v839 = vadd.f32 %v816, %v838
        %840 = vmatmul.f32.gmra.mxu0 %v323
        %v841 = vpop.f32.mrf.mxu0
        %v842 = vadd.f32 %v816, %v841
        %843 = vmatmul.f32.gmra.mxu0 %v326
        %v844 = vpop.f32.mrf.mxu0
        %v845 = vadd.f32 %v816, %v844
        %846 = vmatmul.f32.gmra.mxu0 %v329
        %v847 = vpop.f32.mrf.mxu0
        %v848 = vadd.f32 %v816, %v847
        %849 = vmatmul.f32.gmra.mxu0 %v332
        %v850 = vpop.f32.mrf.mxu0
        %v851 = vadd.f32 %v816, %v850
        %852 = vmatmul.f32.gmra.mxu0 %v335
        %v853 = vpop.f32.mrf.mxu0
        %v854 = vadd.f32 %v816, %v853
        %855 = vmatmul.f32.gmra.mxu0 %v338
        %v856 = vpop.f32.mrf.mxu0
        %v857 = vadd.f32 %v816, %v856
        %858 = vdwg.mxu0
        %v859 = vtanh.pop %v836
        %v860 = vtanh.pop %v839
        %v861 = vtanh.pop %v842
        %v862 = vtanh.pop %v845
        %v863 = vtanh.pop %v848
        %v864 = vtanh.pop %v851
        %v865 = vtanh.pop %v854
        %v866 = vtanh.pop %v857
        %v867 = vmul.f32 %v859, %v397
        %v868 = vmul.f32 %v860, %v398
        %v869 = vmul.f32 %v861, %v399
        %v870 = vmul.f32 %v862, %v400
        %v871 = vmul.f32 %v863, %v401
        %v872 = vmul.f32 %v864, %v402
        %v873 = vmul.f32 %v865, %v403
        %v874 = vmul.f32 %v866, %v404
        %v875 = vsel %vm315, %v867, 0.0
        %876 = vadd.xlane.f32.xlu0 %v875
        %v877 = vpop.xlane.xlu0 %876
        %v878 = vsel %vm315, %v868, 0.0
        %879 = vadd.xlane.f32.xlu0 %v878
        %v880 = vpop.xlane.xlu0 %879
        %v881 = vsel %vm315, %v869, 0.0
        %882 = vadd.xlane.f32.xlu0 %v881
        %v883 = vpop.xlane.xlu0 %882
        %v884 = vsel %vm315, %v870, 0.0
        %885 = vadd.xlane.f32.xlu0 %v884
        %v886 = vpop.xlane.xlu0 %885
        %v887 = vsel %vm315, %v871, 0.0
        %888 = vadd.xlane.f32.xlu0 %v887
        %v889 = vpop.xlane.xlu0 %888
        %v890 = vsel %vm315, %v872, 0.0
        %891 = vadd.xlane.f32.xlu0 %v890
        %v892 = vpop.xlane.xlu0 %891
        %v893 = vsel %vm315, %v873, 0.0
        %894 = vadd.xlane.f32.xlu0 %v893
        %v895 = vpop.xlane.xlu0 %894
        %v896 = vsel %vm315, %v874, 0.0
        %897 = vadd.xlane.f32.xlu0 %v896
        %v898 = vpop.xlane.xlu0 %897
        %v899 = vadd.f32 %v877, %v452
        %v900 = vadd.f32 %v880, %v459
        %v901 = vadd.f32 %v883, %v466
        %v902 = vadd.f32 %v886, %v473
        %v903 = vadd.f32 %v889, %v480
        %v904 = vadd.f32 %v892, %v487
        %v905 = vadd.f32 %v895, %v494
        %v906 = vadd.f32 %v898, %v501
        %915 = vset.pattern.permute.xlu0 0
        %916 = vperm.xlu0 %915, %v899
        %v917 = vpop.permute.xlu0 %916
        %918 = vset.pattern.permute.xlu0 0
        %919 = vperm.xlu0 %918, %v900
        %v920 = vpop.permute.xlu0 %919
        %921 = vset.pattern.permute.xlu0 0
        %922 = vperm.xlu0 %921, %v901
        %v923 = vpop.permute.xlu0 %922
        %924 = vset.pattern.permute.xlu0 0
        %925 = vperm.xlu0 %924, %v902
        %v926 = vpop.permute.xlu0 %925
        %927 = vset.pattern.permute.xlu0 0
        %928 = vperm.xlu0 %927, %v903
        %v929 = vpop.permute.xlu0 %928
        %930 = vset.pattern.permute.xlu0 0
        %931 = vperm.xlu0 %930, %v904
        %v932 = vpop.permute.xlu0 %931
        %933 = vset.pattern.permute.xlu0 0
        %934 = vperm.xlu0 %933, %v905
        %v935 = vpop.permute.xlu0 %934
        %936 = vset.pattern.permute.xlu0 0
        %937 = vperm.xlu0 %936, %v906
        %v938 = vpop.permute.xlu0 %937
        %v939 = vperm.slane %v917, %v551
        %v940 = vperm.slane %v920, %v551
        %v941 = vperm.slane %v923, %v551
        %v942 = vperm.slane %v926, %v551
        %v943 = vperm.slane %v929, %v551
        %v944 = vperm.slane %v932, %v551
        %v945 = vperm.slane %v935, %v551
        %v946 = vperm.slane %v938, %v551
        %v947 = vsel %vm560, %v940, %v939
        %v948 = vsel %vm562, %v941, %v947
        %v949 = vsel %vm564, %v942, %v948
        %v950 = vsel %vm566, %v943, %v949
        %v951 = vsel %vm568, %v944, %v950
        %v952 = vsel %vm570, %v945, %v951
        %v953 = vsel %vm572, %v946, %v952
        %v955 = vsel %vm575, %v953, -inf
        %956 = vmax.xlane.f32.xlu0 %v955
        %v957 = vpop.xlane.xlu0 %956
        %v959 = vperm.slane %v957, 0
        %v960 = vperm.slane %v957, 1
        %v961 = vperm.slane %v957, 2
        %v962 = vperm.slane %v957, 3
        %v963 = vperm.slane %v957, 4
        %v964 = vperm.slane %v957, 5
        %v965 = vperm.slane %v957, 6
        %v966 = vperm.slane %v957, 7
        %v975 = vsub.f32 %v899, %v959
        %v976 = vsub.f32 %v900, %v960
        %v977 = vsub.f32 %v901, %v961
        %v978 = vsub.f32 %v902, %v962
        %v979 = vsub.f32 %v903, %v963
        %v980 = vsub.f32 %v904, %v964
        %v981 = vsub.f32 %v905, %v965
        %v982 = vsub.f32 %v906, %v966
        %v983 = vmul.f32 %v975, 1.442695
        %v984 = vpow.pop %v983
        %v985 = vmul.f32 %v976, 1.442695
        %v986 = vpow.pop %v985
        %v987 = vmul.f32 %v977, 1.442695
        %v988 = vpow.pop %v987
        %v989 = vmul.f32 %v978, 1.442695
        %v990 = vpow.pop %v989
        %v991 = vmul.f32 %v979, 1.442695
        %v992 = vpow.pop %v991
        %v993 = vmul.f32 %v980, 1.442695
        %v994 = vpow.pop %v993
        %v995 = vmul.f32 %v981, 1.442695
        %v996 = vpow.pop %v995
        %v997 = vmul.f32 %v982, 1.442695
        %v998 = vpow.pop %v997
        %1007 = vset.pattern.permute.xlu0 0
        %1008 = vperm.xlu0 %1007, %v984
        %v1009 = vpop.permute.xlu0 %1008
        %1010 = vset.pattern.permute.xlu0 0
        %1011 = vperm.xlu0 %1010, %v986
        %v1012 = vpop.permute.xlu0 %1011
        %1013 = vset.pattern.permute.xlu0 0
        %1014 = vperm.xlu0 %1013, %v988
        %v1015 = vpop.permute.xlu0 %1014
        %1016 = vset.pattern.permute.xlu0 0
        %1017 = vperm.xlu0 %1016, %v990
        %v1018 = vpop.permute.xlu0 %1017
        %1019 = vset.pattern.permute.xlu0 0
        %1020 = vperm.xlu0 %1019, %v992
        %v1021 = vpop.permute.xlu0 %1020
        %1022 = vset.pattern.permute.xlu0 0
        %1023 = vperm.xlu0 %1022, %v994
        %v1024 = vpop.permute.xlu0 %1023
        %1025 = vset.pattern.permute.xlu0 0
        %1026 = vperm.xlu0 %1025, %v996
        %v1027 = vpop.permute.xlu0 %1026
        %1028 = vset.pattern.permute.xlu0 0
        %1029 = vperm.xlu0 %1028, %v998
        %v1030 = vpop.permute.xlu0 %1029
        %v1031 = vperm.slane %v1009, %v551
        %v1032 = vperm.slane %v1012, %v551
        %v1033 = vperm.slane %v1015, %v551
        %v1034 = vperm.slane %v1018, %v551
        %v1035 = vperm.slane %v1021, %v551
        %v1036 = vperm.slane %v1024, %v551
        %v1037 = vperm.slane %v1027, %v551
        %v1038 = vperm.slane %v1030, %v551
        %v1039 = vsel %vm560, %v1032, %v1031
        %v1040 = vsel %vm562, %v1033, %v1039
        %v1041 = vsel %vm564, %v1034, %v1040
        %v1042 = vsel %vm566, %v1035, %v1041
        %v1043 = vsel %vm568, %v1036, %v1042
        %v1044 = vsel %vm570, %v1037, %v1043
        %v1045 = vsel %vm572, %v1038, %v1044
        %v1047 = vsel %vm575, %v1045, 0.0
        %1048 = vadd.xlane.f32.xlu0 %v1047
        %v1049 = vpop.xlane.xlu0 %1048
        %v1051 = vperm.slane %v1049, 0
        %v1052 = vperm.slane %v1049, 1
        %v1053 = vperm.slane %v1049, 2
        %v1054 = vperm.slane %v1049, 3
        %v1055 = vperm.slane %v1049, 4
        %v1056 = vperm.slane %v1049, 5
        %v1057 = vperm.slane %v1049, 6
        %v1058 = vperm.slane %v1049, 7
        %v1067 = vrcp.pop %v1051
        %v1068 = vmul.f32 %v1051, %v1067
        %v1069 = vsub.f32 1.0, %v1068
        %v1070 = vmul.f32 %v1067, %v1069
        %v1071 = vadd.f32 %v1067, %v1070
        %vm1072 = vweird.f32 %v1051
        %vm1073 = vweird.f32 %v1067
        %vm1074 = vmor %vm1072, %vm1073
        %v1075 = vsel %vm1074, %v1067, %v1071
        %v1076 = vand.u32 2147483647, %v1051
        %vm1077 = vcmp.eq.f32.partialorder %v1076, 8.507059e+37
        %v1078 = vand.u32 %v1051, 2147483648
        %v1079 = vor.u32 1.1754944e-38, %v1078
        %v1080 = vsel %vm1077, %v1079, %v1075
        %v1081 = vmul.f32 %v984, %v1080
        %v1082 = vrcp.pop %v1052
        %v1083 = vmul.f32 %v1052, %v1082
        %v1084 = vsub.f32 1.0, %v1083
        %v1085 = vmul.f32 %v1082, %v1084
        %v1086 = vadd.f32 %v1082, %v1085
        %vm1087 = vweird.f32 %v1052
        %vm1088 = vweird.f32 %v1082
        %vm1089 = vmor %vm1087, %vm1088
        %v1090 = vsel %vm1089, %v1082, %v1086
        %v1091 = vand.u32 2147483647, %v1052
        %vm1092 = vcmp.eq.f32.partialorder %v1091, 8.507059e+37
        %v1093 = vand.u32 %v1052, 2147483648
        %v1094 = vor.u32 1.1754944e-38, %v1093
        %v1095 = vsel %vm1092, %v1094, %v1090
        %v1096 = vmul.f32 %v986, %v1095
        %v1097 = vrcp.pop %v1053
        %v1098 = vmul.f32 %v1053, %v1097
        %v1099 = vsub.f32 1.0, %v1098
        %v1100 = vmul.f32 %v1097, %v1099
        %v1101 = vadd.f32 %v1097, %v1100
        %vm1102 = vweird.f32 %v1053
        %vm1103 = vweird.f32 %v1097
        %vm1104 = vmor %vm1102, %vm1103
        %v1105 = vsel %vm1104, %v1097, %v1101
        %v1106 = vand.u32 2147483647, %v1053
        %vm1107 = vcmp.eq.f32.partialorder %v1106, 8.507059e+37
        %v1108 = vand.u32 %v1053, 2147483648
        %v1109 = vor.u32 1.1754944e-38, %v1108
        %v1110 = vsel %vm1107, %v1109, %v1105
        %v1111 = vmul.f32 %v988, %v1110
        %v1112 = vrcp.pop %v1054
        %v1113 = vmul.f32 %v1054, %v1112
        %v1114 = vsub.f32 1.0, %v1113
        %v1115 = vmul.f32 %v1112, %v1114
        %v1116 = vadd.f32 %v1112, %v1115
        %vm1117 = vweird.f32 %v1054
        %vm1118 = vweird.f32 %v1112
        %vm1119 = vmor %vm1117, %vm1118
        %v1120 = vsel %vm1119, %v1112, %v1116
        %v1121 = vand.u32 2147483647, %v1054
        %vm1122 = vcmp.eq.f32.partialorder %v1121, 8.507059e+37
        %v1123 = vand.u32 %v1054, 2147483648
        %v1124 = vor.u32 1.1754944e-38, %v1123
        %v1125 = vsel %vm1122, %v1124, %v1120
        %v1126 = vmul.f32 %v990, %v1125
        %v1127 = vrcp.pop %v1055
        %v1128 = vmul.f32 %v1055, %v1127
        %v1129 = vsub.f32 1.0, %v1128
        %v1130 = vmul.f32 %v1127, %v1129
        %v1131 = vadd.f32 %v1127, %v1130
        %vm1132 = vweird.f32 %v1055
        %vm1133 = vweird.f32 %v1127
        %vm1134 = vmor %vm1132, %vm1133
        %v1135 = vsel %vm1134, %v1127, %v1131
        %v1136 = vand.u32 2147483647, %v1055
        %vm1137 = vcmp.eq.f32.partialorder %v1136, 8.507059e+37
        %v1138 = vand.u32 %v1055, 2147483648
        %v1139 = vor.u32 1.1754944e-38, %v1138
        %v1140 = vsel %vm1137, %v1139, %v1135
        %v1141 = vmul.f32 %v992, %v1140
        %v1142 = vrcp.pop %v1056
        %v1143 = vmul.f32 %v1056, %v1142
        %v1144 = vsub.f32 1.0, %v1143
        %v1145 = vmul.f32 %v1142, %v1144
        %v1146 = vadd.f32 %v1142, %v1145
        %vm1147 = vweird.f32 %v1056
        %vm1148 = vweird.f32 %v1142
        %vm1149 = vmor %vm1147, %vm1148
        %v1150 = vsel %vm1149, %v1142, %v1146
        %v1151 = vand.u32 2147483647, %v1056
        %vm1152 = vcmp.eq.f32.partialorder %v1151, 8.507059e+37
        %v1153 = vand.u32 %v1056, 2147483648
        %v1154 = vor.u32 1.1754944e-38, %v1153
        %v1155 = vsel %vm1152, %v1154, %v1150
        %v1156 = vmul.f32 %v994, %v1155
        %v1157 = vrcp.pop %v1057
        %v1158 = vmul.f32 %v1057, %v1157
        %v1159 = vsub.f32 1.0, %v1158
        %v1160 = vmul.f32 %v1157, %v1159
        %v1161 = vadd.f32 %v1157, %v1160
        %vm1162 = vweird.f32 %v1057
        %vm1163 = vweird.f32 %v1157
        %vm1164 = vmor %vm1162, %vm1163
        %v1165 = vsel %vm1164, %v1157, %v1161
        %v1166 = vand.u32 2147483647, %v1057
        %vm1167 = vcmp.eq.f32.partialorder %v1166, 8.507059e+37
        %v1168 = vand.u32 %v1057, 2147483648
        %v1169 = vor.u32 1.1754944e-38, %v1168
        %v1170 = vsel %vm1167, %v1169, %v1165
        %v1171 = vmul.f32 %v996, %v1170
        %v1172 = vrcp.pop %v1058
        %v1173 = vmul.f32 %v1058, %v1172
        %v1174 = vsub.f32 1.0, %v1173
        %v1175 = vmul.f32 %v1172, %v1174
        %v1176 = vadd.f32 %v1172, %v1175
        %vm1177 = vweird.f32 %v1058
        %vm1178 = vweird.f32 %v1172
        %vm1179 = vmor %vm1177, %vm1178
        %v1180 = vsel %vm1179, %v1172, %v1176
        %v1181 = vand.u32 2147483647, %v1058
        %vm1182 = vcmp.eq.f32.partialorder %v1181, 8.507059e+37
        %v1183 = vand.u32 %v1058, 2147483648
        %v1184 = vor.u32 1.1754944e-38, %v1183
        %v1185 = vsel %vm1182, %v1184, %v1180
        %v1186 = vmul.f32 %v998, %v1185
        %v1187 = vmax.f32 %v702, %v1081
        %v1188 = vmax.f32 %v717, %v1096
        %v1189 = vmax.f32 %v732, %v1111
        %v1190 = vmax.f32 %v747, %v1126
        %v1191 = vmax.f32 %v762, %v1141
        %v1192 = vmax.f32 %v777, %v1156
        %v1193 = vmax.f32 %v792, %v1171
        %v1194 = vmax.f32 %v807, %v1186
        %s1195 = scalar_lea.vmem [#allocation5], 64
        %v1196 = vld [vmem:[%s1195] sm:$0xff]
        %v1197 = vld [vmem:[%s1195 + $0x8] sm:$0xff]
        %v1198 = vld [vmem:[%s1195 + $0x10] sm:$0xff]
        %v1199 = vld [vmem:[%s1195 + $0x18] sm:$0xff]
        %s1200 = scalar_lea.vmem %s4, 2
        %v1201 = vld [vmem:[%s1200] sm:$0x1]
        %v1203 = vperm.slane %v1201, 0
        %1205 = vmatpush.msra.mxu0 0.0
        %1206 = vmatpush.msra.mxu0 0.0
        %1207 = vmatpush.msra.mxu0 0.0
        %1208 = vmatpush.msra.mxu0 0.0
        %1209 = vmatpush.msra.mxu0 0.0
        %1210 = vmatpush.msra.mxu0 0.0
        %1211 = vmatpush.msra.mxu0 0.0
        %1212 = vmatpush.msra.mxu0 0.0
        %1213 = vmatpush.msra.mxu0 0.0
        %1214 = vmatpush.msra.mxu0 0.0
        %1215 = vmatpush.msra.mxu0 0.0
        %1216 = vmatpush.msra.mxu0 0.0
        %1217 = vmatpush.msra.mxu0 %v1199
        %1218 = vmatpush.msra.mxu0 %v1198
        %1219 = vmatpush.msra.mxu0 %v1197
        %1220 = vmatpush.msra.mxu0 %v1196
        %1221 = vmatmul.f32.gmra.mxu0 %v317
        %v1222 = vpop.f32.mrf.mxu0
        %v1223 = vadd.f32 %v1203, %v1222
        %1224 = vmatmul.f32.gmra.mxu0 %v320
        %v1225 = vpop.f32.mrf.mxu0
        %v1226 = vadd.f32 %v1203, %v1225
        %1227 = vmatmul.f32.gmra.mxu0 %v323
        %v1228 = vpop.f32.mrf.mxu0
        %v1229 = vadd.f32 %v1203, %v1228
        %1230 = vmatmul.f32.gmra.mxu0 %v326
        %v1231 = vpop.f32.mrf.mxu0
        %v1232 = vadd.f32 %v1203, %v1231
        %1233 = vmatmul.f32.gmra.mxu0 %v329
        %v1234 = vpop.f32.mrf.mxu0
        %v1235 = vadd.f32 %v1203, %v1234
        %1236 = vmatmul.f32.gmra.mxu0 %v332
        %v1237 = vpop.f32.mrf.mxu0
        %v1238 = vadd.f32 %v1203, %v1237
        %1239 = vmatmul.f32.gmra.mxu0 %v335
        %v1240 = vpop.f32.mrf.mxu0
        %v1241 = vadd.f32 %v1203, %v1240
        %1242 = vmatmul.f32.gmra.mxu0 %v338
        %v1243 = vpop.f32.mrf.mxu0
        %v1244 = vadd.f32 %v1203, %v1243
        %1245 = vdwg.mxu0
        %v1246 = vtanh.pop %v1223
        %v1247 = vtanh.pop %v1226
        %v1248 = vtanh.pop %v1229
        %v1249 = vtanh.pop %v1232
        %v1250 = vtanh.pop %v1235
        %v1251 = vtanh.pop %v1238
        %v1252 = vtanh.pop %v1241
        %v1253 = vtanh.pop %v1244
        %v1254 = vmul.f32 %v1246, %v397
        %v1255 = vmul.f32 %v1247, %v398
        %v1256 = vmul.f32 %v1248, %v399
        %v1257 = vmul.f32 %v1249, %v400
        %v1258 = vmul.f32 %v1250, %v401
        %v1259 = vmul.f32 %v1251, %v402
        %v1260 = vmul.f32 %v1252, %v403
        %v1261 = vmul.f32 %v1253, %v404
        %v1262 = vsel %vm315, %v1254, 0.0
        %1263 = vadd.xlane.f32.xlu0 %v1262
        %v1264 = vpop.xlane.xlu0 %1263
        %v1265 = vsel %vm315, %v1255, 0.0
        %1266 = vadd.xlane.f32.xlu0 %v1265
        %v1267 = vpop.xlane.xlu0 %1266
        %v1268 = vsel %vm315, %v1256, 0.0
        %1269 = vadd.xlane.f32.xlu0 %v1268
        %v1270 = vpop.xlane.xlu0 %1269
        %v1271 = vsel %vm315, %v1257, 0.0
        %1272 = vadd.xlane.f32.xlu0 %v1271
        %v1273 = vpop.xlane.xlu0 %1272
        %v1274 = vsel %vm315, %v1258, 0.0
        %1275 = vadd.xlane.f32.xlu0 %v1274
        %v1276 = vpop.xlane.xlu0 %1275
        %v1277 = vsel %vm315, %v1259, 0.0
        %1278 = vadd.xlane.f32.xlu0 %v1277
        %v1279 = vpop.xlane.xlu0 %1278
        %v1280 = vsel %vm315, %v1260, 0.0
        %1281 = vadd.xlane.f32.xlu0 %v1280
        %v1282 = vpop.xlane.xlu0 %1281
        %v1283 = vsel %vm315, %v1261, 0.0
        %1284 = vadd.xlane.f32.xlu0 %v1283
        %v1285 = vpop.xlane.xlu0 %1284
        %v1286 = vadd.f32 %v1264, %v452
        %v1287 = vadd.f32 %v1267, %v459
        %v1288 = vadd.f32 %v1270, %v466
        %v1289 = vadd.f32 %v1273, %v473
        %v1290 = vadd.f32 %v1276, %v480
        %v1291 = vadd.f32 %v1279, %v487
        %v1292 = vadd.f32 %v1282, %v494
        %v1293 = vadd.f32 %v1285, %v501
        %1302 = vset.pattern.permute.xlu0 0
        %1303 = vperm.xlu0 %1302, %v1286
        %v1304 = vpop.permute.xlu0 %1303
        %1305 = vset.pattern.permute.xlu0 0
        %1306 = vperm.xlu0 %1305, %v1287
        %v1307 = vpop.permute.xlu0 %1306
        %1308 = vset.pattern.permute.xlu0 0
        %1309 = vperm.xlu0 %1308, %v1288
        %v1310 = vpop.permute.xlu0 %1309
        %1311 = vset.pattern.permute.xlu0 0
        %1312 = vperm.xlu0 %1311, %v1289
        %v1313 = vpop.permute.xlu0 %1312
        %1314 = vset.pattern.permute.xlu0 0
        %1315 = vperm.xlu0 %1314, %v1290
        %v1316 = vpop.permute.xlu0 %1315
        %1317 = vset.pattern.permute.xlu0 0
        %1318 = vperm.xlu0 %1317, %v1291
        %v1319 = vpop.permute.xlu0 %1318
        %1320 = vset.pattern.permute.xlu0 0
        %1321 = vperm.xlu0 %1320, %v1292
        %v1322 = vpop.permute.xlu0 %1321
        %1323 = vset.pattern.permute.xlu0 0
        %1324 = vperm.xlu0 %1323, %v1293
        %v1325 = vpop.permute.xlu0 %1324
        %v1326 = vperm.slane %v1304, %v551
        %v1327 = vperm.slane %v1307, %v551
        %v1328 = vperm.slane %v1310, %v551
        %v1329 = vperm.slane %v1313, %v551
        %v1330 = vperm.slane %v1316, %v551
        %v1331 = vperm.slane %v1319, %v551
        %v1332 = vperm.slane %v1322, %v551
        %v1333 = vperm.slane %v1325, %v551
        %v1334 = vsel %vm560, %v1327, %v1326
        %v1335 = vsel %vm562, %v1328, %v1334
        %v1336 = vsel %vm564, %v1329, %v1335
        %v1337 = vsel %vm566, %v1330, %v1336
        %v1338 = vsel %vm568, %v1331, %v1337
        %v1339 = vsel %vm570, %v1332, %v1338
        %v1340 = vsel %vm572, %v1333, %v1339
        %v1342 = vsel %vm575, %v1340, -inf
        %1343 = vmax.xlane.f32.xlu0 %v1342
        %v1344 = vpop.xlane.xlu0 %1343
        %v1346 = vperm.slane %v1344, 0
        %v1347 = vperm.slane %v1344, 1
        %v1348 = vperm.slane %v1344, 2
        %v1349 = vperm.slane %v1344, 3
        %v1350 = vperm.slane %v1344, 4
        %v1351 = vperm.slane %v1344, 5
        %v1352 = vperm.slane %v1344, 6
        %v1353 = vperm.slane %v1344, 7
        %v1362 = vsub.f32 %v1286, %v1346
        %v1363 = vsub.f32 %v1287, %v1347
        %v1364 = vsub.f32 %v1288, %v1348
        %v1365 = vsub.f32 %v1289, %v1349
        %v1366 = vsub.f32 %v1290, %v1350
        %v1367 = vsub.f32 %v1291, %v1351
        %v1368 = vsub.f32 %v1292, %v1352
        %v1369 = vsub.f32 %v1293, %v1353
        %v1370 = vmul.f32 %v1362, 1.442695
        %v1371 = vpow.pop %v1370
        %v1372 = vmul.f32 %v1363, 1.442695
        %v1373 = vpow.pop %v1372
        %v1374 = vmul.f32 %v1364, 1.442695
        %v1375 = vpow.pop %v1374
        %v1376 = vmul.f32 %v1365, 1.442695
        %v1377 = vpow.pop %v1376
        %v1378 = vmul.f32 %v1366, 1.442695
        %v1379 = vpow.pop %v1378
        %v1380 = vmul.f32 %v1367, 1.442695
        %v1381 = vpow.pop %v1380
        %v1382 = vmul.f32 %v1368, 1.442695
        %v1383 = vpow.pop %v1382
        %v1384 = vmul.f32 %v1369, 1.442695
        %v1385 = vpow.pop %v1384
        %1394 = vset.pattern.permute.xlu0 0
        %1395 = vperm.xlu0 %1394, %v1371
        %v1396 = vpop.permute.xlu0 %1395
        %1397 = vset.pattern.permute.xlu0 0
        %1398 = vperm.xlu0 %1397, %v1373
        %v1399 = vpop.permute.xlu0 %1398
        %1400 = vset.pattern.permute.xlu0 0
        %1401 = vperm.xlu0 %1400, %v1375
        %v1402 = vpop.permute.xlu0 %1401
        %1403 = vset.pattern.permute.xlu0 0
        %1404 = vperm.xlu0 %1403, %v1377
        %v1405 = vpop.permute.xlu0 %1404
        %1406 = vset.pattern.permute.xlu0 0
        %1407 = vperm.xlu0 %1406, %v1379
        %v1408 = vpop.permute.xlu0 %1407
        %1409 = vset.pattern.permute.xlu0 0
        %1410 = vperm.xlu0 %1409, %v1381
        %v1411 = vpop.permute.xlu0 %1410
        %1412 = vset.pattern.permute.xlu0 0
        %1413 = vperm.xlu0 %1412, %v1383
        %v1414 = vpop.permute.xlu0 %1413
        %1415 = vset.pattern.permute.xlu0 0
        %1416 = vperm.xlu0 %1415, %v1385
        %v1417 = vpop.permute.xlu0 %1416
        %v1418 = vperm.slane %v1396, %v551
        %v1419 = vperm.slane %v1399, %v551
        %v1420 = vperm.slane %v1402, %v551
        %v1421 = vperm.slane %v1405, %v551
        %v1422 = vperm.slane %v1408, %v551
        %v1423 = vperm.slane %v1411, %v551
        %v1424 = vperm.slane %v1414, %v551
        %v1425 = vperm.slane %v1417, %v551
        %v1426 = vsel %vm560, %v1419, %v1418
        %v1427 = vsel %vm562, %v1420, %v1426
        %v1428 = vsel %vm564, %v1421, %v1427
        %v1429 = vsel %vm566, %v1422, %v1428
        %v1430 = vsel %vm568, %v1423, %v1429
        %v1431 = vsel %vm570, %v1424, %v1430
        %v1432 = vsel %vm572, %v1425, %v1431
        %v1434 = vsel %vm575, %v1432, 0.0
        %1435 = vadd.xlane.f32.xlu0 %v1434
        %v1436 = vpop.xlane.xlu0 %1435
        %v1438 = vperm.slane %v1436, 0
        %v1439 = vperm.slane %v1436, 1
        %v1440 = vperm.slane %v1436, 2
        %v1441 = vperm.slane %v1436, 3
        %v1442 = vperm.slane %v1436, 4
        %v1443 = vperm.slane %v1436, 5
        %v1444 = vperm.slane %v1436, 6
        %v1445 = vperm.slane %v1436, 7
        %v1454 = vrcp.pop %v1438
        %v1455 = vmul.f32 %v1438, %v1454
        %v1456 = vsub.f32 1.0, %v1455
        %v1457 = vmul.f32 %v1454, %v1456
        %v1458 = vadd.f32 %v1454, %v1457
        %vm1459 = vweird.f32 %v1438
        %vm1460 = vweird.f32 %v1454
        %vm1461 = vmor %vm1459, %vm1460
        %v1462 = vsel %vm1461, %v1454, %v1458
        %v1463 = vand.u32 2147483647, %v1438
        %vm1464 = vcmp.eq.f32.partialorder %v1463, 8.507059e+37
        %v1465 = vand.u32 %v1438, 2147483648
        %v1466 = vor.u32 1.1754944e-38, %v1465
        %v1467 = vsel %vm1464, %v1466, %v1462
        %v1468 = vmul.f32 %v1371, %v1467
        %v1469 = vrcp.pop %v1439
        %v1470 = vmul.f32 %v1439, %v1469
        %v1471 = vsub.f32 1.0, %v1470
        %v1472 = vmul.f32 %v1469, %v1471
        %v1473 = vadd.f32 %v1469, %v1472
        %vm1474 = vweird.f32 %v1439
        %vm1475 = vweird.f32 %v1469
        %vm1476 = vmor %vm1474, %vm1475
        %v1477 = vsel %vm1476, %v1469, %v1473
        %v1478 = vand.u32 2147483647, %v1439
        %vm1479 = vcmp.eq.f32.partialorder %v1478, 8.507059e+37
        %v1480 = vand.u32 %v1439, 2147483648
        %v1481 = vor.u32 1.1754944e-38, %v1480
        %v1482 = vsel %vm1479, %v1481, %v1477
        %v1483 = vmul.f32 %v1373, %v1482
        %v1484 = vrcp.pop %v1440
        %v1485 = vmul.f32 %v1440, %v1484
        %v1486 = vsub.f32 1.0, %v1485
        %v1487 = vmul.f32 %v1484, %v1486
        %v1488 = vadd.f32 %v1484, %v1487
        %vm1489 = vweird.f32 %v1440
        %vm1490 = vweird.f32 %v1484
        %vm1491 = vmor %vm1489, %vm1490
        %v1492 = vsel %vm1491, %v1484, %v1488
        %v1493 = vand.u32 2147483647, %v1440
        %vm1494 = vcmp.eq.f32.partialorder %v1493, 8.507059e+37
        %v1495 = vand.u32 %v1440, 2147483648
        %v1496 = vor.u32 1.1754944e-38, %v1495
        %v1497 = vsel %vm1494, %v1496, %v1492
        %v1498 = vmul.f32 %v1375, %v1497
        %v1499 = vrcp.pop %v1441
        %v1500 = vmul.f32 %v1441, %v1499
        %v1501 = vsub.f32 1.0, %v1500
        %v1502 = vmul.f32 %v1499, %v1501
        %v1503 = vadd.f32 %v1499, %v1502
        %vm1504 = vweird.f32 %v1441
        %vm1505 = vweird.f32 %v1499
        %vm1506 = vmor %vm1504, %vm1505
        %v1507 = vsel %vm1506, %v1499, %v1503
        %v1508 = vand.u32 2147483647, %v1441
        %vm1509 = vcmp.eq.f32.partialorder %v1508, 8.507059e+37
        %v1510 = vand.u32 %v1441, 2147483648
        %v1511 = vor.u32 1.1754944e-38, %v1510
        %v1512 = vsel %vm1509, %v1511, %v1507
        %v1513 = vmul.f32 %v1377, %v1512
        %v1514 = vrcp.pop %v1442
        %v1515 = vmul.f32 %v1442, %v1514
        %v1516 = vsub.f32 1.0, %v1515
        %v1517 = vmul.f32 %v1514, %v1516
        %v1518 = vadd.f32 %v1514, %v1517
        %vm1519 = vweird.f32 %v1442
        %vm1520 = vweird.f32 %v1514
        %vm1521 = vmor %vm1519, %vm1520
        %v1522 = vsel %vm1521, %v1514, %v1518
        %v1523 = vand.u32 2147483647, %v1442
        %vm1524 = vcmp.eq.f32.partialorder %v1523, 8.507059e+37
        %v1525 = vand.u32 %v1442, 2147483648
        %v1526 = vor.u32 1.1754944e-38, %v1525
        %v1527 = vsel %vm1524, %v1526, %v1522
        %v1528 = vmul.f32 %v1379, %v1527
        %v1529 = vrcp.pop %v1443
        %v1530 = vmul.f32 %v1443, %v1529
        %v1531 = vsub.f32 1.0, %v1530
        %v1532 = vmul.f32 %v1529, %v1531
        %v1533 = vadd.f32 %v1529, %v1532
        %vm1534 = vweird.f32 %v1443
        %vm1535 = vweird.f32 %v1529
        %vm1536 = vmor %vm1534, %vm1535
        %v1537 = vsel %vm1536, %v1529, %v1533
        %v1538 = vand.u32 2147483647, %v1443
        %vm1539 = vcmp.eq.f32.partialorder %v1538, 8.507059e+37
        %v1540 = vand.u32 %v1443, 2147483648
        %v1541 = vor.u32 1.1754944e-38, %v1540
        %v1542 = vsel %vm1539, %v1541, %v1537
        %v1543 = vmul.f32 %v1381, %v1542
        %v1544 = vrcp.pop %v1444
        %v1545 = vmul.f32 %v1444, %v1544
        %v1546 = vsub.f32 1.0, %v1545
        %v1547 = vmul.f32 %v1544, %v1546
        %v1548 = vadd.f32 %v1544, %v1547
        %vm1549 = vweird.f32 %v1444
        %vm1550 = vweird.f32 %v1544
        %vm1551 = vmor %vm1549, %vm1550
        %v1552 = vsel %vm1551, %v1544, %v1548
        %v1553 = vand.u32 2147483647, %v1444
        %vm1554 = vcmp.eq.f32.partialorder %v1553, 8.507059e+37
        %v1555 = vand.u32 %v1444, 2147483648
        %v1556 = vor.u32 1.1754944e-38, %v1555
        %v1557 = vsel %vm1554, %v1556, %v1552
        %v1558 = vmul.f32 %v1383, %v1557
        %v1559 = vrcp.pop %v1445
        %v1560 = vmul.f32 %v1445, %v1559
        %v1561 = vsub.f32 1.0, %v1560
        %v1562 = vmul.f32 %v1559, %v1561
        %v1563 = vadd.f32 %v1559, %v1562
        %vm1564 = vweird.f32 %v1445
        %vm1565 = vweird.f32 %v1559
        %vm1566 = vmor %vm1564, %vm1565
        %v1567 = vsel %vm1566, %v1559, %v1563
        %v1568 = vand.u32 2147483647, %v1445
        %vm1569 = vcmp.eq.f32.partialorder %v1568, 8.507059e+37
        %v1570 = vand.u32 %v1445, 2147483648
        %v1571 = vor.u32 1.1754944e-38, %v1570
        %v1572 = vsel %vm1569, %v1571, %v1567
        %v1573 = vmul.f32 %v1385, %v1572
        %v1574 = vmax.f32 %v1187, %v1468
        %v1575 = vmax.f32 %v1188, %v1483
        %v1576 = vmax.f32 %v1189, %v1498
        %v1577 = vmax.f32 %v1190, %v1513
        %v1578 = vmax.f32 %v1191, %v1528
        %v1579 = vmax.f32 %v1192, %v1543
        %v1580 = vmax.f32 %v1193, %v1558
        %v1581 = vmax.f32 %v1194, %v1573
        %1583 = vset.pattern.permute.xlu0 0
        %1584 = vperm.xlu0 %1583, %v1574
        %v1585 = vpop.permute.xlu0 %1584
        %1588 = vset.pattern.permute.xlu0 0
        %1589 = vperm.xlu0 %1588, %v1575
        %v1590 = vpop.permute.xlu0 %1589
        %1593 = vset.pattern.permute.xlu0 0
        %1594 = vperm.xlu0 %1593, %v1576
        %v1595 = vpop.permute.xlu0 %1594
        %1598 = vset.pattern.permute.xlu0 0
        %1599 = vperm.xlu0 %1598, %v1577
        %v1600 = vpop.permute.xlu0 %1599
        %1603 = vset.pattern.permute.xlu0 0
        %1604 = vperm.xlu0 %1603, %v1578
        %v1605 = vpop.permute.xlu0 %1604
        %1608 = vset.pattern.permute.xlu0 0
        %1609 = vperm.xlu0 %1608, %v1579
        %v1610 = vpop.permute.xlu0 %1609
        %1613 = vset.pattern.permute.xlu0 0
        %1614 = vperm.xlu0 %1613, %v1580
        %v1615 = vpop.permute.xlu0 %1614
        %1618 = vset.pattern.permute.xlu0 0
        %1619 = vperm.xlu0 %1618, %v1581
        %v1620 = vpop.permute.xlu0 %1619
        %v1622 = vmul.f32 %v1585, %v297
        %v1623 = vmul.f32 %v1590, %v298
        %v1624 = vmul.f32 %v1595, %v299
        %v1625 = vmul.f32 %v1600, %v300
        %v1626 = vmul.f32 %v1605, %v301
        %v1627 = vmul.f32 %v1610, %v302
        %v1628 = vmul.f32 %v1615, %v303
        %v1629 = vmul.f32 %v1620, %v304
        %v1630 = vsel %vm315, %v1622, 0.0
        %v1631 = vrot.slane %v1630, 4
        %v1632 = vadd.f32 %v1630, %v1631
        %v1633 = vrot.slane %v1632, 2
        %v1634 = vadd.f32 %v1632, %v1633
        %v1635 = vrot.slane %v1634, 1
        %v1636 = vadd.f32 %v1634, %v1635
        %v1637 = vsel %vm315, %v1623, 0.0
        %v1638 = vrot.slane %v1637, 4
        %v1639 = vadd.f32 %v1637, %v1638
        %v1640 = vrot.slane %v1639, 2
        %v1641 = vadd.f32 %v1639, %v1640
        %v1642 = vrot.slane %v1641, 1
        %v1643 = vadd.f32 %v1641, %v1642
        %v1644 = vsel %vm315, %v1624, 0.0
        %v1645 = vrot.slane %v1644, 4
        %v1646 = vadd.f32 %v1644, %v1645
        %v1647 = vrot.slane %v1646, 2
        %v1648 = vadd.f32 %v1646, %v1647
        %v1649 = vrot.slane %v1648, 1
        %v1650 = vadd.f32 %v1648, %v1649
        %v1651 = vsel %vm315, %v1625, 0.0
        %v1652 = vrot.slane %v1651, 4
        %v1653 = vadd.f32 %v1651, %v1652
        %v1654 = vrot.slane %v1653, 2
        %v1655 = vadd.f32 %v1653, %v1654
        %v1656 = vrot.slane %v1655, 1
        %v1657 = vadd.f32 %v1655, %v1656
        %v1658 = vsel %vm315, %v1626, 0.0
        %v1659 = vrot.slane %v1658, 4
        %v1660 = vadd.f32 %v1658, %v1659
        %v1661 = vrot.slane %v1660, 2
        %v1662 = vadd.f32 %v1660, %v1661
        %v1663 = vrot.slane %v1662, 1
        %v1664 = vadd.f32 %v1662, %v1663
        %v1665 = vsel %vm315, %v1627, 0.0
        %v1666 = vrot.slane %v1665, 4
        %v1667 = vadd.f32 %v1665, %v1666
        %v1668 = vrot.slane %v1667, 2
        %v1669 = vadd.f32 %v1667, %v1668
        %v1670 = vrot.slane %v1669, 1
        %v1671 = vadd.f32 %v1669, %v1670
        %v1672 = vsel %vm315, %v1628, 0.0
        %v1673 = vrot.slane %v1672, 4
        %v1674 = vadd.f32 %v1672, %v1673
        %v1675 = vrot.slane %v1674, 2
        %v1676 = vadd.f32 %v1674, %v1675
        %v1677 = vrot.slane %v1676, 1
        %v1678 = vadd.f32 %v1676, %v1677
        %v1679 = vsel %vm315, %v1629, 0.0
        %v1680 = vrot.slane %v1679, 4
        %v1681 = vadd.f32 %v1679, %v1680
        %v1682 = vrot.slane %v1681, 2
        %v1683 = vadd.f32 %v1681, %v1682
        %v1684 = vrot.slane %v1683, 1
        %v1685 = vadd.f32 %v1683, %v1684
        %v1694 = vsel %vm560, %v1643, %v1636
        %v1695 = vsel %vm562, %v1650, %v1694
        %v1696 = vsel %vm564, %v1657, %v1695
        %v1697 = vsel %vm566, %v1664, %v1696
        %v1698 = vsel %vm568, %v1671, %v1697
        %v1699 = vsel %vm570, %v1678, %v1698
        %v1700 = vsel %vm572, %v1685, %v1699
        %1702 = vst.msk [vmem:[%s287] sm:$0xff] %vm315, %v1700
        %s1703 = sand.u32 %s151, 1
        %s1704 = scalar_lea.sflag [#allocation4], %s1703
        %s1705 = sand.u32 %s151, 1
        %s1706 = smul.addr %s1705, 8
        %s1707 = scalar_lea.vmem [#allocation7], %s1706
        // Predicated region
        $region49: #{tpu_custom_call.1} parent=39 // pred_check
          %p1708 = pneg %p161
        $region50: #{tpu_custom_call.1} parent=39 // pred_check_branch
          %1710 = sbr.rel (%p1708) target = $region52
        $region51: #{tpu_custom_call.1} parent=39 // pred_region
          %1712 = vsyncadd %s1704, 0
          %s1713 = smul.addr %s23, 8
          %s1714 = scalar_lea.hbm %s5, %s1713
          %s1716 = sshll.u32 %s1707, 4
          %s1717 = int_to_ptr.vmem [resolvable:$true] %s1716
          %s1718 = sshll.u32 %s1714, 4
          %s1719 = int_to_ptr.hbm [resolvable:$true] %s1718
          %1721 = dma.vmem_to_hbm [thread:$0]  %s1717, 128, %s1719, %s1704
        $region52: #{tpu_custom_call.1} parent=39 // pred_fallthru
          _
      $region40: #{tpu_custom_call.1} parent=5 // pred_fallthru
        _
      %p1722 = scmp.le.s32.totalorder 2, %s18
      // Predicated region
      $region53: #{tpu_custom_call.1} parent=5 // pred_check
        %p1723 = pneg %p1722
      $region54: #{tpu_custom_call.1} parent=5 // pred_check_branch
        %1725 = sbr.rel (%p1723) target = $region56
      $region55: #{tpu_custom_call.1} parent=5 // pred_region
        %s1726 = ssub.s32 %s18, 2
        // Predicated region
        $region57: #{tpu_custom_call.1} parent=55 // pred_check
          %p1727 = pneg %p167
        $region58: #{tpu_custom_call.1} parent=55 // pred_check_branch
          %1729 = sbr.rel (%p1727) target = $region60
        $region59: #{tpu_custom_call.1} parent=55 // pred_region
          %s1730 = sand.u32 %s152, 1
          %s1731 = scalar_lea.sflag [#allocation4], %s1730
          %s1732 = sand.u32 %s152, 1
          %s1733 = smul.addr %s1732, 8
          %s1734 = scalar_lea.vmem [#allocation7], %s1733
          %1736 = dma.done %s1731, 128
        $region60: #{tpu_custom_call.1} parent=55 // pred_fallthru
          _
      $region56: #{tpu_custom_call.1} parent=5 // pred_fallthru
        _
    $region6: #{tpu_custom_call.1} parent=1 // loop_footer
      %s22 = sadd.s32 1, %s18
    $region7: #{tpu_custom_call.1} parent=1 // loop_footer_branch
      %17 = sbr.rel target = $region3
    $region8: #{tpu_custom_call.1} parent=1 // loop_exit
      _
    %1737 = vsyncpa [#allocation3], 1
    %s1738 = scalar_lea.sflag [#allocation3], 1
    %1739 = vsyncpa %s1738, 1
    %1740 = vsyncpa [#allocation6], 1
    %1741 = vsyncpa [#allocation4], 1
    %s1742 = scalar_lea.sflag [#allocation4], 1
    %1743 = vsyncpa %s1742, 1

</llo_original>
